<compile_context>
chip_gen: v7x
topology: tpu7x:2x2x1
jax: 0.10.0
libtpu: 0.0.40
codegen_flags: <defaults>
</compile_context>

<pallas_src>
import math
import functools
import numpy as np

import jax
import jax.numpy as jnp
from jax.experimental import pallas as pl
from jax.experimental.pallas import tpu as pltpu


# ----------------------------------------------------------------------------
# Static interpolation / banded-weight construction (runs once, outside jit)
# ----------------------------------------------------------------------------
def _interp_matrix(out_size, in_size):
    """Row-interpolation matrix for bilinear resize with align_corners=True."""
    if in_size == 1:
        return np.ones((out_size, 1), np.float32)
    src = np.arange(out_size) * (in_size - 1) / (out_size - 1)
    i0 = np.clip(np.floor(src).astype(np.int64), 0, in_size - 2)
    frac = (src - i0).astype(np.float32)
    m = np.zeros((out_size, in_size), np.float32)
    m[np.arange(out_size), i0] = 1.0 - frac
    m[np.arange(out_size), i0 + 1] = frac
    return m


def _band_matrices(wk, Wo):
    """wk: (KH, KW, Cin, Cout) conv weights (BN scale already folded).

    Returns (KH, Wo*Cin, Wo*Cout): per vertical tap kh, the block-banded
    matrix mapping one lane-merged (W, Cin) input row to the lane-merged
    (W, Cout) conv output row, with the horizontal taps and zero 'same'
    W-padding folded in.
    """
    KH, KW, Cin, Cout = wk.shape
    pad = KW // 2
    mats = []
    for kh in range(KH):
        m = jnp.zeros((Wo * Cin, Wo * Cout), jnp.float32)
        for kw in range(KW):
            # S[w_in, w_out] = 1  iff  w_in = w_out + kw - pad
            sel = np.eye(Wo, k=pad - kw, dtype=np.float32)
            m = m + jnp.kron(jnp.asarray(sel), wk[kh, kw])
        mats.append(m)
    return jnp.stack(mats)


def prepare_params(params, *, H1, W1, C1, H2, W2, C2):
    """Fold BN, horizontal conv taps, zero W-padding, the bilinear
    W-interpolation and the channel concat into matmul-ready weights."""
    w1 = params['w1'] * params['s1'][None, None, None, :]
    w2 = params['w2'] * params['s2'][None, None, None, :]
    KH, KW, Cin, Cout = w1.shape
    assert Cin == C1 + C2, (Cin, C1, C2)
    Ho, Wo = H2, W2

    wa = w1[:, :, :C2, :]     # multiplies the x2 (skip) stream: torch.cat puts x2 first
    wb = w1[:, :, C2:, :]     # multiplies the upsampled-x1 stream
    band_a = _band_matrices(wa, Wo)                        # (KH, Wo*C2, Wo*Cout)
    band_b = _band_matrices(wb, Wo)                        # (KH, Wo*C1, Wo*Cout)

    # Bilinear W-interpolation (align_corners=True) in the lane-merged layout.
    mw = _interp_matrix(Wo, W1)                                              # (Wo, W1)
    bw = jnp.asarray(np.kron(mw.T, np.eye(C1, dtype=np.float32)))            # (W1*C1, Wo*C1)

    # conv1 weight: rows [0, W1*C1) act on the (not-yet-W-interpolated) x1
    # stream (resize folded in), rows [W1*C1, W1*C1+Wo*C2) act on the x2 stream.
    d1 = jnp.stack([jnp.concatenate([bw @ band_b[kh], band_a[kh]], axis=0)
                    for kh in range(KH)]).astype(jnp.bfloat16)   # (KH, W1*C1+Wo*C2, Wo*Cout)
    d2 = _band_matrices(w2, Wo).astype(jnp.bfloat16)             # (KH, Wo*Cout, Wo*Cout)

    mh = jnp.asarray(_interp_matrix(Ho, H1)).astype(jnp.bfloat16)            # (Ho, H1)
    b1 = jnp.tile(params['b1'], Wo).reshape(1, Wo * Cout).astype(jnp.float32)
    b2 = jnp.tile(params['b2'], Wo).reshape(1, Wo * Cout).astype(jnp.float32)
    return {'mh': mh, 'd1': d1, 'b1': b1, 'd2': d2, 'b2': b2}


# ----------------------------------------------------------------------------
# Fused kernel: one image per grid step, everything resident in VMEM.
# ----------------------------------------------------------------------------
def _up_fused_kernel(x1_ref, x2_ref, mh_ref, d1_ref, b1_ref, d2_ref, b2_ref, o_ref):
    bf16, f32 = jnp.bfloat16, jnp.float32
    KH = d1_ref.shape[0]

    x1 = x1_ref[0].astype(bf16)          # (H1, W1*C1)
    x2 = x2_ref[0].astype(bf16)          # (Ho, Wo*C2)
    Ho = x2.shape[0]

    # Bilinear upsample, H direction only (W direction is folded into d1).
    u = jnp.dot(mh_ref[...], x1, preferred_element_type=f32).astype(bf16)   # (Ho, W1*C1)

    # Fused concat (x1-stream lanes ++ x2-stream lanes) and 'same' H padding
    # (one zero boundary row top/bottom).
    row = jnp.concatenate([u, x2], axis=1)                                   # (Ho, K1)
    zr = jnp.zeros((KH // 2, row.shape[1]), bf16)
    s1 = jnp.concatenate([zr, row, zr], axis=0)                              # (Ho+2, K1)

    # conv1 + folded BN + ReLU: KH row-shifted lane-dense matmuls.
    acc1 = jnp.dot(s1[0:Ho], d1_ref[0], preferred_element_type=f32)
    for kh in range(1, KH):
        acc1 = acc1 + jnp.dot(s1[kh:kh + Ho], d1_ref[kh], preferred_element_type=f32)
    y1 = jnp.maximum(acc1 + b1_ref[...], 0.0).astype(bf16)                   # (Ho, Wo*Cout)

    # conv2 + folded BN + ReLU.
    zr2 = jnp.zeros((KH // 2, y1.shape[1]), bf16)
    s2 = jnp.concatenate([zr2, y1, zr2], axis=0)                             # (Ho+2, Wo*Cout)
    acc2 = jnp.dot(s2[0:Ho], d2_ref[0], preferred_element_type=f32)
    for kh in range(1, KH):
        acc2 = acc2 + jnp.dot(s2[kh:kh + Ho], d2_ref[kh], preferred_element_type=f32)

    # Lane-dense block store: (Ho, Wo*Cout) = (16, 256).
    o_ref[0] = jnp.maximum(acc2 + b2_ref[...], 0.0)


@jax.jit
def up_forward(prep, x1, x2):
    """x1: (N, H1, W1, C1) low-res features; x2: (N, H2, W2, C2) skip (NHWC).
    Returns (N, H2, W2, Cout) NHWC — values match Up.forward (eval-mode BN)."""
    N, H1, W1, C1 = x1.shape
    _, Ho, Wo, C2 = x2.shape
    KH, K1, NW = prep['d1'].shape
    Cout = NW // Wo
    assert K1 == W1 * C1 + Wo * C2

    x1f = x1.reshape(N, H1, W1 * C1)
    x2f = x2.reshape(N, Ho, Wo * C2)

    out = pl.pallas_call(
        _up_fused_kernel,
        out_shape=jax.ShapeDtypeStruct((N, Ho, Wo * Cout), jnp.float32),
        grid=(N,),
        in_specs=[
            pl.BlockSpec((1, H1, W1 * C1), lambda n: (n, 0, 0)),
            pl.BlockSpec((1, Ho, Wo * C2), lambda n: (n, 0, 0)),
            pl.BlockSpec((Ho, H1), lambda n: (0, 0)),
            pl.BlockSpec((KH, K1, Wo * Cout), lambda n: (0, 0, 0)),
            pl.BlockSpec((1, Wo * Cout), lambda n: (0, 0)),
            pl.BlockSpec((KH, Wo * Cout, Wo * Cout), lambda n: (0, 0, 0)),
            pl.BlockSpec((1, Wo * Cout), lambda n: (0, 0)),
        ],
        out_specs=pl.BlockSpec((1, Ho, Wo * Cout), lambda n: (n, 0, 0)),
        compiler_params=pltpu.CompilerParams(
            dimension_semantics=("parallel",),
            vmem_limit_bytes=32 * 1024 * 1024),
    )(x1f, x2f, prep['mh'], prep['d1'], prep['b1'], prep['d2'], prep['b2'])
    return out.reshape(N, Ho, Wo, Cout)


# ----------------------------------------------------------------------------
# Parameters (synthetic, deterministic; BN folded to inference-time affine)
# ----------------------------------------------------------------------------
def init_params(key, in_channels, out_channels):
    ks = jax.random.split(key, 4)

    def conv_w(k, cin, cout):
        fan_in = 3 * 3 * cin
        return jax.random.normal(k, (3, 3, cin, cout), jnp.float32) / math.sqrt(fan_in)

    def bn(k, c):
        k1, k2, k3, k4 = jax.random.split(k, 4)
        gamma = 1.0 + 0.1 * jax.random.normal(k1, (c,), jnp.float32)
        beta = 0.1 * jax.random.normal(k2, (c,), jnp.float32)
        mean = 0.1 * jax.random.normal(k3, (c,), jnp.float32)
        var = 0.5 + jax.random.uniform(k4, (c,), jnp.float32)
        scale = gamma / jnp.sqrt(var + 1e-5)
        bias = beta - mean * scale
        return scale, bias

    s1, b1 = bn(ks[1], out_channels)
    s2, b2 = bn(ks[3], out_channels)
    return {'w1': conv_w(ks[0], in_channels, out_channels), 's1': s1, 'b1': b1,
            'w2': conv_w(ks[2], out_channels, out_channels), 's2': s2, 'b2': b2}


# ----------------------------------------------------------------------------
# Pure-JAX f32 reference (same semantics as Up.forward, eval-mode BN)
# ----------------------------------------------------------------------------
def reference_forward(params, x1, x2):
    N, H1, W1, C1 = x1.shape
    _, H2, W2, C2 = x2.shape
    mh = jnp.asarray(_interp_matrix(H2, H1))
    mw = jnp.asarray(_interp_matrix(W2, W1))
    xu = jnp.einsum('oh,nhwc->nowc', mh, x1)
    xu = jnp.einsum('pw,nowc->nopc', mw, xu)
    x = jnp.concatenate([x2, xu], axis=-1)

    def conv_bn_relu(x, w, s, b):
        y = jax.lax.conv_general_dilated(
            x, w, (1, 1), 'SAME', dimension_numbers=('NHWC', 'HWIO', 'NHWC'))
        return jnp.maximum(y * s + b, 0.0)

    y = conv_bn_relu(x, params['w1'], params['s1'], params['b1'])
    y = conv_bn_relu(y, params['w2'], params['s2'], params['b2'])
    return y


if __name__ == "__main__":
    key = jax.random.PRNGKey(0)
    kp, kx1, kx2 = jax.random.split(key, 3)

    N = 2
    C1, H1, W1 = 16, 8, 8            # x1: low-res features (to be upsampled)
    scale_factor = 2
    C2 = 16                          # x2: skip connection at target resolution
    H2, W2 = H1 * scale_factor, W1 * scale_factor
    in_channels, out_channels = C1 + C2, 16

    params = init_params(kp, in_channels, out_channels)
    prep = prepare_params(params, H1=H1, W1=W1, C1=C1, H2=H2, W2=W2, C2=C2)

    x1_nchw = jax.random.normal(kx1, (N, C1, H1, W1), jnp.float32)
    x2_nchw = jax.random.normal(kx2, (N, C2, H2, W2), jnp.float32)
    x1 = jnp.transpose(x1_nchw, (0, 2, 3, 1))
    x2 = jnp.transpose(x2_nchw, (0, 2, 3, 1))

    out_nhwc = up_forward(prep, x1, x2)
    out_nhwc = jax.block_until_ready(out_nhwc)

    assert out_nhwc.shape == (N, H2, W2, out_channels), out_nhwc.shape
    assert bool(jnp.all(jnp.isfinite(out_nhwc)))

    # Correctness vs f32 XLA reference (bf16 MXU operands -> loose tolerance).
    ref = reference_forward(params, x1, x2)
    err = float(jnp.max(jnp.abs(out_nhwc - ref)))
    assert err < 2e-1, f"max abs error vs reference: {err}"

    out_nchw = jnp.transpose(out_nhwc, (0, 3, 1, 2))   # match PyTorch NCHW layout
    assert out_nchw.shape == (N, out_channels, H2, W2), out_nchw.shape
    print("KERNEL_OK")
</pallas_src>

<mosaic_0001>
module attributes {stable_mosaic.version = 11 : i64} {
  func.func @_up_fused_kernel(%arg0: i32, %arg1: memref<1x8x128xf32, #tpu.memory_space<vmem>>, %arg2: memref<1x16x256xf32, #tpu.memory_space<vmem>>, %arg3: memref<16x8xbf16, #tpu.memory_space<vmem>>, %arg4: memref<3x384x256xbf16, #tpu.memory_space<vmem>>, %arg5: memref<1x256xf32, #tpu.memory_space<vmem>>, %arg6: memref<3x256x256xbf16, #tpu.memory_space<vmem>>, %arg7: memref<1x256xf32, #tpu.memory_space<vmem>>, %arg8: memref<1x16x256xf32, #tpu.memory_space<vmem>>) attributes {dimension_semantics = [#tpu.dimension_semantics<parallel>], iteration_bounds = array<i64: 2>, scalar_prefetch = 0 : i64, scratch_operands = 0 : i64, tpu.core_type = #tpu.core_type<tc>, window_params = [{transform_indices = @transform_0, window_bounds = array<i64: 1, 8, 128>}, {transform_indices = @transform_1, window_bounds = array<i64: 1, 16, 256>}, {pipeline_mode = #tpu.pipeline_mode<synchronous>, transform_indices = @transform_2, window_bounds = array<i64: 16, 8>}, {pipeline_mode = #tpu.pipeline_mode<synchronous>, transform_indices = @transform_3, window_bounds = array<i64: 3, 384, 256>}, {pipeline_mode = #tpu.pipeline_mode<synchronous>, transform_indices = @transform_4, window_bounds = array<i64: 1, 256>}, {pipeline_mode = #tpu.pipeline_mode<synchronous>, transform_indices = @transform_5, window_bounds = array<i64: 3, 256, 256>}, {pipeline_mode = #tpu.pipeline_mode<synchronous>, transform_indices = @transform_6, window_bounds = array<i64: 1, 256>}, {transform_indices = @transform_7, window_bounds = array<i64: 1, 16, 256>}]} {
    %c0 = arith.constant 0 : index
    %c0_0 = arith.constant 0 : index
    %c0_1 = arith.constant 0 : index
    %0 = vector.load %arg1[%c0, %c0_0, %c0_1] : memref<1x8x128xf32, #tpu.memory_space<vmem>>, vector<1x8x128xf32>
    %1 = vector.shape_cast %0 : vector<1x8x128xf32> to vector<8x128xf32>
    %2 = arith.truncf %1 : vector<8x128xf32> to vector<8x128xbf16>
    %c0_2 = arith.constant 0 : index
    %c0_3 = arith.constant 0 : index
    %c0_4 = arith.constant 0 : index
    %3 = vector.load %arg2[%c0_2, %c0_3, %c0_4] : memref<1x16x256xf32, #tpu.memory_space<vmem>>, vector<1x16x256xf32>
    %4 = vector.shape_cast %3 : vector<1x16x256xf32> to vector<16x256xf32>
    %5 = arith.truncf %4 : vector<16x256xf32> to vector<16x256xbf16>
    %c0_5 = arith.constant 0 : index
    %c0_6 = arith.constant 0 : index
    %6 = vector.load %arg3[%c0_5, %c0_6] : memref<16x8xbf16, #tpu.memory_space<vmem>>, vector<16x8xbf16>
    %cst = arith.constant dense<0.000000e+00> : vector<16x128xf32>
    %7 = tpu.matmul %6, %2, %cst {dimension_numbers = #tpu.dot_dimension_numbers<[1], [0], [0], [1], [0, 0, 1, 1], [], []>} : vector<16x8xbf16>, vector<8x128xbf16>, vector<16x128xf32> -> vector<16x128xf32>
    %8 = arith.truncf %7 : vector<16x128xf32> to vector<16x128xbf16>
    %9 = tpu.concatenate %8, %5 in 1 : vector<16x128xbf16>, vector<16x256xbf16> -> vector<16x384xbf16>
    %cst_7 = arith.constant 0.000000e+00 : bf16
    %10 = vector.broadcast %cst_7 : bf16 to vector<1x384xbf16>
    %11 = tpu.concatenate %10, %9, %10 in 0 : vector<1x384xbf16>, vector<16x384xbf16>, vector<1x384xbf16> -> vector<18x384xbf16>
    %12 = vector.extract_strided_slice %11 {offsets = [0, 0], sizes = [16, 384], strides = [1, 1]} : vector<18x384xbf16> to vector<16x384xbf16>
    %c0_8 = arith.constant 0 : index
    %c0_9 = arith.constant 0 : index
    %c0_10 = arith.constant 0 : index
    %13 = vector.load %arg4[%c0_8, %c0_9, %c0_10] : memref<3x384x256xbf16, #tpu.memory_space<vmem>>, vector<1x384x256xbf16>
    %14 = vector.shape_cast %13 : vector<1x384x256xbf16> to vector<384x256xbf16>
    %cst_11 = arith.constant dense<0.000000e+00> : vector<16x256xf32>
    %15 = tpu.matmul %12, %14, %cst_11 {dimension_numbers = #tpu.dot_dimension_numbers<[1], [0], [0], [1], [0, 0, 1, 1], [], []>} : vector<16x384xbf16>, vector<384x256xbf16>, vector<16x256xf32> -> vector<16x256xf32>
    %16 = vector.extract_strided_slice %11 {offsets = [1, 0], sizes = [16, 384], strides = [1, 1]} : vector<18x384xbf16> to vector<16x384xbf16>
    %c1 = arith.constant 1 : index
    %c0_12 = arith.constant 0 : index
    %c0_13 = arith.constant 0 : index
    %17 = vector.load %arg4[%c1, %c0_12, %c0_13] : memref<3x384x256xbf16, #tpu.memory_space<vmem>>, vector<1x384x256xbf16>
    %18 = vector.shape_cast %17 : vector<1x384x256xbf16> to vector<384x256xbf16>
    %cst_14 = arith.constant dense<0.000000e+00> : vector<16x256xf32>
    %19 = tpu.matmul %16, %18, %cst_14 {dimension_numbers = #tpu.dot_dimension_numbers<[1], [0], [0], [1], [0, 0, 1, 1], [], []>} : vector<16x384xbf16>, vector<384x256xbf16>, vector<16x256xf32> -> vector<16x256xf32>
    %20 = arith.addf %15, %19 : vector<16x256xf32>
    %21 = vector.extract_strided_slice %11 {offsets = [2, 0], sizes = [16, 384], strides = [1, 1]} : vector<18x384xbf16> to vector<16x384xbf16>
    %c2 = arith.constant 2 : index
    %c0_15 = arith.constant 0 : index
    %c0_16 = arith.constant 0 : index
    %22 = vector.load %arg4[%c2, %c0_15, %c0_16] : memref<3x384x256xbf16, #tpu.memory_space<vmem>>, vector<1x384x256xbf16>
    %23 = vector.shape_cast %22 : vector<1x384x256xbf16> to vector<384x256xbf16>
    %cst_17 = arith.constant dense<0.000000e+00> : vector<16x256xf32>
    %24 = tpu.matmul %21, %23, %cst_17 {dimension_numbers = #tpu.dot_dimension_numbers<[1], [0], [0], [1], [0, 0, 1, 1], [], []>} : vector<16x384xbf16>, vector<384x256xbf16>, vector<16x256xf32> -> vector<16x256xf32>
    %25 = arith.addf %20, %24 : vector<16x256xf32>
    %c0_18 = arith.constant 0 : index
    %c0_19 = arith.constant 0 : index
    %26 = vector.load %arg5[%c0_18, %c0_19] : memref<1x256xf32, #tpu.memory_space<vmem>>, vector<1x256xf32>
    %27 = vector.broadcast %26 : vector<1x256xf32> to vector<16x256xf32>
    %28 = arith.addf %25, %27 : vector<16x256xf32>
    %cst_20 = arith.constant 0.000000e+00 : f32
    %29 = vector.broadcast %cst_20 : f32 to vector<16x256xf32>
    %30 = arith.maximumf %28, %29 : vector<16x256xf32>
    %31 = arith.truncf %30 : vector<16x256xf32> to vector<16x256xbf16>
    %cst_21 = arith.constant 0.000000e+00 : bf16
    %32 = vector.broadcast %cst_21 : bf16 to vector<1x256xbf16>
    %33 = tpu.concatenate %32, %31, %32 in 0 : vector<1x256xbf16>, vector<16x256xbf16>, vector<1x256xbf16> -> vector<18x256xbf16>
    %34 = vector.extract_strided_slice %33 {offsets = [0, 0], sizes = [16, 256], strides = [1, 1]} : vector<18x256xbf16> to vector<16x256xbf16>
    %c0_22 = arith.constant 0 : index
    %c0_23 = arith.constant 0 : index
    %c0_24 = arith.constant 0 : index
    %35 = vector.load %arg6[%c0_22, %c0_23, %c0_24] : memref<3x256x256xbf16, #tpu.memory_space<vmem>>, vector<1x256x256xbf16>
    %36 = vector.shape_cast %35 : vector<1x256x256xbf16> to vector<256x256xbf16>
    %cst_25 = arith.constant dense<0.000000e+00> : vector<16x256xf32>
    %37 = tpu.matmul %34, %36, %cst_25 {dimension_numbers = #tpu.dot_dimension_numbers<[1], [0], [0], [1], [0, 0, 1, 1], [], []>} : vector<16x256xbf16>, vector<256x256xbf16>, vector<16x256xf32> -> vector<16x256xf32>
    %38 = vector.extract_strided_slice %33 {offsets = [1, 0], sizes = [16, 256], strides = [1, 1]} : vector<18x256xbf16> to vector<16x256xbf16>
    %c1_26 = arith.constant 1 : index
    %c0_27 = arith.constant 0 : index
    %c0_28 = arith.constant 0 : index
    %39 = vector.load %arg6[%c1_26, %c0_27, %c0_28] : memref<3x256x256xbf16, #tpu.memory_space<vmem>>, vector<1x256x256xbf16>
    %40 = vector.shape_cast %39 : vector<1x256x256xbf16> to vector<256x256xbf16>
    %cst_29 = arith.constant dense<0.000000e+00> : vector<16x256xf32>
    %41 = tpu.matmul %38, %40, %cst_29 {dimension_numbers = #tpu.dot_dimension_numbers<[1], [0], [0], [1], [0, 0, 1, 1], [], []>} : vector<16x256xbf16>, vector<256x256xbf16>, vector<16x256xf32> -> vector<16x256xf32>
    %42 = arith.addf %37, %41 : vector<16x256xf32>
    %43 = vector.extract_strided_slice %33 {offsets = [2, 0], sizes = [16, 256], strides = [1, 1]} : vector<18x256xbf16> to vector<16x256xbf16>
    %c2_30 = arith.constant 2 : index
    %c0_31 = arith.constant 0 : index
    %c0_32 = arith.constant 0 : index
    %44 = vector.load %arg6[%c2_30, %c0_31, %c0_32] : memref<3x256x256xbf16, #tpu.memory_space<vmem>>, vector<1x256x256xbf16>
    %45 = vector.shape_cast %44 : vector<1x256x256xbf16> to vector<256x256xbf16>
    %cst_33 = arith.constant dense<0.000000e+00> : vector<16x256xf32>
    %46 = tpu.matmul %43, %45, %cst_33 {dimension_numbers = #tpu.dot_dimension_numbers<[1], [0], [0], [1], [0, 0, 1, 1], [], []>} : vector<16x256xbf16>, vector<256x256xbf16>, vector<16x256xf32> -> vector<16x256xf32>
    %47 = arith.addf %42, %46 : vector<16x256xf32>
    %c0_34 = arith.constant 0 : index
    %c0_35 = arith.constant 0 : index
    %48 = vector.load %arg7[%c0_34, %c0_35] : memref<1x256xf32, #tpu.memory_space<vmem>>, vector<1x256xf32>
    %49 = vector.broadcast %48 : vector<1x256xf32> to vector<16x256xf32>
    %50 = arith.addf %47, %49 : vector<16x256xf32>
    %cst_36 = arith.constant 0.000000e+00 : f32
    %51 = vector.broadcast %cst_36 : f32 to vector<16x256xf32>
    %52 = arith.maximumf %50, %51 : vector<16x256xf32>
    %c0_37 = arith.constant 0 : index
    %c0_38 = arith.constant 0 : index
    %c0_39 = arith.constant 0 : index
    %53 = vector.load %arg8[%c0_37, %c0_38, %c0_39] : memref<1x16x256xf32, #tpu.memory_space<vmem>>, vector<1x16x256xf32>
    %54 = vector.shape_cast %53 : vector<1x16x256xf32> to vector<16x256xf32>
    %55 = vector.shape_cast %52 : vector<16x256xf32> to vector<1x16x256xf32>
    tpu.vector_store %arg8[%c0_37, %c0_38, %c0_39], %55 {strides = array<i32>} : memref<1x16x256xf32, #tpu.memory_space<vmem>>, vector<1x16x256xf32>,
    return
  }
  func.func @transform_0(%arg0: i32) -> (i32, i32, i32) {
    %c0_i32 = arith.constant 0 : i32
    %c0_i32_0 = arith.constant 0 : i32
    %c0_i32_1 = arith.constant 0 : i32
    return %arg0, %c0_i32, %c0_i32_0 : i32, i32, i32
  }
  func.func @transform_1(%arg0: i32) -> (i32, i32, i32) {
    %c0_i32 = arith.constant 0 : i32
    %c0_i32_0 = arith.constant 0 : i32
    %c0_i32_1 = arith.constant 0 : i32
    return %arg0, %c0_i32, %c0_i32_0 : i32, i32, i32
  }
  func.func @transform_2(%arg0: i32) -> (i32, i32) {
    %c0_i32 = arith.constant 0 : i32
    %c0_i32_0 = arith.constant 0 : i32
    %c0_i32_1 = arith.constant 0 : i32
    return %c0_i32, %c0_i32_0 : i32, i32
  }
  func.func @transform_3(%arg0: i32) -> (i32, i32, i32) {
    %c0_i32 = arith.constant 0 : i32
    %c0_i32_0 = arith.constant 0 : i32
    %c0_i32_1 = arith.constant 0 : i32
    %c0_i32_2 = arith.constant 0 : i32
    return %c0_i32, %c0_i32_0, %c0_i32_1 : i32, i32, i32
  }
  func.func @transform_4(%arg0: i32) -> (i32, i32) {
    %c0_i32 = arith.constant 0 : i32
    %c0_i32_0 = arith.constant 0 : i32
    %c0_i32_1 = arith.constant 0 : i32
    return %c0_i32, %c0_i32_0 : i32, i32
  }
  func.func @transform_5(%arg0: i32) -> (i32, i32, i32) {
    %c0_i32 = arith.constant 0 : i32
    %c0_i32_0 = arith.constant 0 : i32
    %c0_i32_1 = arith.constant 0 : i32
    %c0_i32_2 = arith.constant 0 : i32
    return %c0_i32, %c0_i32_0, %c0_i32_1 : i32, i32, i32
  }
  func.func @transform_6(%arg0: i32) -> (i32, i32) {
    %c0_i32 = arith.constant 0 : i32
    %c0_i32_0 = arith.constant 0 : i32
    %c0_i32_1 = arith.constant 0 : i32
    return %c0_i32, %c0_i32_0 : i32, i32
  }
  func.func @transform_7(%arg0: i32) -> (i32, i32, i32) {
    %c0_i32 = arith.constant 0 : i32
    %c0_i32_0 = arith.constant 0 : i32
    %c0_i32_1 = arith.constant 0 : i32
    return %arg0, %c0_i32, %c0_i32_0 : i32, i32, i32
  }
}

</mosaic_0001>

<llo_original>
// kernel: up_forward.1
$region0: #{up_forward.1}
  #allocation0 [shape = 'u32[]', space=smem, size = 0x4, offset = 0x4, fixed_abs, tag = 'smem constant byte address 0x4 - core index']
  #allocation1 [shape = 'u32[144,128]{1,0:T(1,128)}', space=vmem, size = 0x12000, scoped, tag = 'internal scratch']
  %s0 = inlined_call_operand.vmem [shape: f32[2,8,128], index: 0, kind: input, shape index: {}]
  %s1 = inlined_call_operand.vmem [shape: f32[2,16,256], index: 1, kind: input, shape index: {}]
  %s2 = inlined_call_operand.vmem [shape: bf16[16,8], index: 2, kind: input, shape index: {}]
  %s3 = inlined_call_operand.hbm [shape: bf16[3,384,256], index: 3, kind: input, shape index: {}]
  %s4 = inlined_call_operand.vmem [shape: f32[1,256], index: 4, kind: input, shape index: {}]
  %s5 = inlined_call_operand.hbm [shape: bf16[3,256,256], index: 5, kind: input, shape index: {}]
  %s6 = inlined_call_operand.vmem [shape: f32[1,256], index: 6, kind: input, shape index: {}]
  %s7 = inlined_call_operand.vmem [shape: f32[2,16,256], index: 7, kind: output, shape index: {}]
  %s8 = sld [smem:[#allocation0]]
  $region69: #{up_forward.1} parent=0
    _
  %s10 = ssub.s32 1, %s8
  %s11 = scalar_select 0, %s10, %s8
  $region1: #{up_forward.1} parent=0
    #allocation2 [shape = 'u8[589824]{0}', space=vmem, size = 0x90000, scoped, tag = 'input window, operand 3, single buffered']
    #allocation3 [shape = 's32[2]{0}', space=sflag, size = 0x8, scoped, tag = 'scoped memory for up_forward.1']
    #allocation4 [shape = 'u8[393216]{0}', space=vmem, size = 0x60000, scoped, tag = 'input window, operand 5, single buffered']
    #allocation5 [shape = 's32[1]{0}', space=sflag, size = 0x4, scoped, tag = 'scoped memory for up_forward.1']
    %12 = vsyncpa [#allocation3], 0
    %13 = vsyncpa [#allocation5], 0
    loop: start=0, step=1, limit=4
    $region2: #{up_forward.1} parent=1 // loop_pre_header
      _
    $region3: #{up_forward.1} parent=1 // loop_header
      %s15 = sphi 0, %s19
      %p16 = scmp.ge.s32.totalorder %s15, 4
      %s25 = sphi 0, %s27
      %s28 = sphi 0, %s25
      %s29 = sphi 0, %s28
      %s45 = sphi 0, %s29
      %s51 = sphi 0, %s53
      %s54 = sphi 0, %s51
      %s55 = sphi 0, %s54
      %s71 = sphi 0, %s55
      %s75 = sphi 0, %s75
      %s77 = sphi 0, %s75
      %s78 = sphi 0, %s77
      %s92 = sphi 0, %s78
      %s96 = sphi 0, %s96
      %s98 = sphi 0, %s96
      %s99 = sphi 0, %s98
      %s113 = sphi 0, %s99
      %s117 = sphi 0, %s117
      %s119 = sphi 0, %s117
      %s120 = sphi 0, %s119
      %s134 = sphi 0, %s120
      %s138 = sphi 0, %s138
      %s140 = sphi 0, %s138
      %s141 = sphi 0, %s140
      %s155 = sphi 0, %s141
      %s159 = sphi 0, %s159
      %s161 = sphi 0, %s159
      %s162 = sphi 0, %s161
      %s176 = sphi 0, %s162
      %s182 = sphi 0, %s184
      %s185 = sphi 0, %s182
      %s186 = sphi 0, %s185
      %s202 = sphi 0, %s186
    $region4: #{up_forward.1} parent=1 // loop_header_branch
      %18 = sbr.rel (%p16) target = $region8
    $region5: #{up_forward.1} parent=1 // loop_body
      %s20 = ssub.s32 %s15, 1
      %s21 = ssub.s32 %s15, 2
      %s22 = sadd.s32 %s15, 1
      %s23 = ssub.s32 %s15, %s22
      %p24 = scmp.eq.s32.totalorder %s23, 0
      %s26 = sadd.s32 %s25, 1
      %s27 = scalar_select %p24, %s25, %s26
      %p30 = pneg %p24
      %p31 = scmp.eq.s32.totalorder %s15, 1
      %p32 = por %p30, %p31
      %p33 = scmp.ne.s32.totalorder %s25, %s28
      %p34 = scmp.eq.s32.totalorder %s15, 0
      %p35 = por %p33, %p34
      %p36 = scmp.ne.s32.totalorder %s25, %s28
      %p37 = scmp.eq.s32.totalorder %s20, 1
      %p38 = por %p36, %p37
      %p39 = scmp.ne.s32.totalorder %s28, %s29
      %p40 = scmp.eq.s32.totalorder %s20, 0
      %p41 = por %p39, %p40
      %p42 = scmp.ne.s32.totalorder %s28, %s29
      %p43 = scmp.eq.s32.totalorder %s21, 1
      %p44 = por %p42, %p43
      %p46 = scmp.ne.s32.totalorder %s29, %s45
      %p47 = scmp.eq.s32.totalorder %s21, 0
      %p48 = por %p46, %p47
      %s49 = ssub.s32 %s15, %s22
      %p50 = scmp.eq.s32.totalorder %s49, 0
      %s52 = sadd.s32 %s51, 1
      %s53 = scalar_select %p50, %s51, %s52
      %p56 = pneg %p50
      %p57 = scmp.eq.s32.totalorder %s15, 1
      %p58 = por %p56, %p57
      %p59 = scmp.ne.s32.totalorder %s51, %s54
      %p60 = scmp.eq.s32.totalorder %s15, 0
      %p61 = por %p59, %p60
      %p62 = scmp.ne.s32.totalorder %s51, %s54
      %p63 = scmp.eq.s32.totalorder %s20, 1
      %p64 = por %p62, %p63
      %p65 = scmp.ne.s32.totalorder %s54, %s55
      %p66 = scmp.eq.s32.totalorder %s20, 0
      %p67 = por %p65, %p66
      %p68 = scmp.ne.s32.totalorder %s54, %s55
      %p69 = scmp.eq.s32.totalorder %s21, 1
      %p70 = por %p68, %p69
      %p72 = scmp.ne.s32.totalorder %s55, %s71
      %p73 = scmp.eq.s32.totalorder %s21, 0
      %p74 = por %p72, %p73
      %s76 = sadd.s32 %s75, 1
      %p79 = scmp.eq.s32.totalorder %s15, 1
      %p80 = scmp.ne.s32.totalorder %s75, %s77
      %p81 = scmp.eq.s32.totalorder %s15, 0
      %p82 = por %p80, %p81
      %p83 = scmp.ne.s32.totalorder %s75, %s77
      %p84 = scmp.eq.s32.totalorder %s20, 1
      %p85 = por %p83, %p84
      %p86 = scmp.ne.s32.totalorder %s77, %s78
      %p87 = scmp.eq.s32.totalorder %s20, 0
      %p88 = por %p86, %p87
      %p89 = scmp.ne.s32.totalorder %s77, %s78
      %p90 = scmp.eq.s32.totalorder %s21, 1
      %p91 = por %p89, %p90
      %p93 = scmp.ne.s32.totalorder %s78, %s92
      %p94 = scmp.eq.s32.totalorder %s21, 0
      %p95 = por %p93, %p94
      %s97 = sadd.s32 %s96, 1
      %p100 = scmp.eq.s32.totalorder %s15, 1
      %p101 = scmp.ne.s32.totalorder %s96, %s98
      %p102 = scmp.eq.s32.totalorder %s15, 0
      %p103 = por %p101, %p102
      %p104 = scmp.ne.s32.totalorder %s96, %s98
      %p105 = scmp.eq.s32.totalorder %s20, 1
      %p106 = por %p104, %p105
      %p107 = scmp.ne.s32.totalorder %s98, %s99
      %p108 = scmp.eq.s32.totalorder %s20, 0
      %p109 = por %p107, %p108
      %p110 = scmp.ne.s32.totalorder %s98, %s99
      %p111 = scmp.eq.s32.totalorder %s21, 1
      %p112 = por %p110, %p111
      %p114 = scmp.ne.s32.totalorder %s99, %s113
      %p115 = scmp.eq.s32.totalorder %s21, 0
      %p116 = por %p114, %p115
      %s118 = sadd.s32 %s117, 1
      %p121 = scmp.eq.s32.totalorder %s15, 1
      %p122 = scmp.ne.s32.totalorder %s117, %s119
      %p123 = scmp.eq.s32.totalorder %s15, 0
      %p124 = por %p122, %p123
      %p125 = scmp.ne.s32.totalorder %s117, %s119
      %p126 = scmp.eq.s32.totalorder %s20, 1
      %p127 = por %p125, %p126
      %p128 = scmp.ne.s32.totalorder %s119, %s120
      %p129 = scmp.eq.s32.totalorder %s20, 0
      %p130 = por %p128, %p129
      %p131 = scmp.ne.s32.totalorder %s119, %s120
      %p132 = scmp.eq.s32.totalorder %s21, 1
      %p133 = por %p131, %p132
      %p135 = scmp.ne.s32.totalorder %s120, %s134
      %p136 = scmp.eq.s32.totalorder %s21, 0
      %p137 = por %p135, %p136
      %s139 = sadd.s32 %s138, 1
      %p142 = scmp.eq.s32.totalorder %s15, 1
      %p143 = scmp.ne.s32.totalorder %s138, %s140
      %p144 = scmp.eq.s32.totalorder %s15, 0
      %p145 = por %p143, %p144
      %p146 = scmp.ne.s32.totalorder %s138, %s140
      %p147 = scmp.eq.s32.totalorder %s20, 1
      %p148 = por %p146, %p147
      %p149 = scmp.ne.s32.totalorder %s140, %s141
      %p150 = scmp.eq.s32.totalorder %s20, 0
      %p151 = por %p149, %p150
      %p152 = scmp.ne.s32.totalorder %s140, %s141
      %p153 = scmp.eq.s32.totalorder %s21, 1
      %p154 = por %p152, %p153
      %p156 = scmp.ne.s32.totalorder %s141, %s155
      %p157 = scmp.eq.s32.totalorder %s21, 0
      %p158 = por %p156, %p157
      %s160 = sadd.s32 %s159, 1
      %p163 = scmp.eq.s32.totalorder %s15, 1
      %p164 = scmp.ne.s32.totalorder %s159, %s161
      %p165 = scmp.eq.s32.totalorder %s15, 0
      %p166 = por %p164, %p165
      %p167 = scmp.ne.s32.totalorder %s159, %s161
      %p168 = scmp.eq.s32.totalorder %s20, 1
      %p169 = por %p167, %p168
      %p170 = scmp.ne.s32.totalorder %s161, %s162
      %p171 = scmp.eq.s32.totalorder %s20, 0
      %p172 = por %p170, %p171
      %p173 = scmp.ne.s32.totalorder %s161, %s162
      %p174 = scmp.eq.s32.totalorder %s21, 1
      %p175 = por %p173, %p174
      %p177 = scmp.ne.s32.totalorder %s162, %s176
      %p178 = scmp.eq.s32.totalorder %s21, 0
      %p179 = por %p177, %p178
      %s180 = ssub.s32 %s15, %s22
      %p181 = scmp.eq.s32.totalorder %s180, 0
      %s183 = sadd.s32 %s182, 1
      %s184 = scalar_select %p181, %s182, %s183
      %p187 = pneg %p181
      %p188 = scmp.eq.s32.totalorder %s15, 1
      %p189 = por %p187, %p188
      %p190 = scmp.ne.s32.totalorder %s182, %s185
      %p191 = scmp.eq.s32.totalorder %s15, 0
      %p192 = por %p190, %p191
      %p193 = scmp.ne.s32.totalorder %s182, %s185
      %p194 = scmp.eq.s32.totalorder %s20, 1
      %p195 = por %p193, %p194
      %p196 = scmp.ne.s32.totalorder %s185, %s186
      %p197 = scmp.eq.s32.totalorder %s20, 0
      %p198 = por %p196, %p197
      %p199 = scmp.ne.s32.totalorder %s185, %s186
      %p200 = scmp.eq.s32.totalorder %s21, 1
      %p201 = por %p199, %p200
      %p203 = scmp.ne.s32.totalorder %s186, %s202
      %p204 = scmp.eq.s32.totalorder %s21, 0
      %p205 = por %p203, %p204
      %p206 = scmp.le.s32.totalorder 1, %s15
      %p207 = scmp.lt.s32.totalorder %s15, 3
      %p208 = pnand %p206, %p207
      %p209 = pneg %p208
      // Predicated region
      $region9: #{up_forward.1} parent=5 // pred_check
        _
      $region10: #{up_forward.1} parent=5 // pred_check_branch
        %211 = sbr.rel (%p208) target = $region12
      $region11: #{up_forward.1} parent=5 // pred_region
        %s212 = ssub.s32 %s15, 1
        // Predicated region
        $region13: #{up_forward.1} parent=11 // pred_check
          %p213 = pneg %p88
        $region14: #{up_forward.1} parent=11 // pred_check_branch
          %215 = sbr.rel (%p213) target = $region16
        $region15: #{up_forward.1} parent=11 // pred_region
          _
        $region16: #{up_forward.1} parent=11 // pred_fallthru
          _
        // Predicated region
        $region17: #{up_forward.1} parent=11 // pred_check
          %p216 = pneg %p109
        $region18: #{up_forward.1} parent=11 // pred_check_branch
          %218 = sbr.rel (%p216) target = $region20
        $region19: #{up_forward.1} parent=11 // pred_region
          %s220 = ssub.s32 18432, 18432
          %221 = vsyncadd [#allocation3], %s220
          %s222 = sshll.u32 [#allocation2], 4
          %s223 = int_to_ptr.vmem [resolvable:$true] %s222
          %228 = dma.hbm_to_vmem [thread:$0]  %s3, 18432, %s223, [#allocation3], 128, 128, 8
        $region20: #{up_forward.1} parent=11 // pred_fallthru
          _
        // Predicated region
        $region21: #{up_forward.1} parent=11 // pred_check
          %p229 = pneg %p130
        $region22: #{up_forward.1} parent=11 // pred_check_branch
          %231 = sbr.rel (%p229) target = $region24
        $region23: #{up_forward.1} parent=11 // pred_region
          _
        $region24: #{up_forward.1} parent=11 // pred_fallthru
          _
        // Predicated region
        $region25: #{up_forward.1} parent=11 // pred_check
          %p232 = pneg %p151
        $region26: #{up_forward.1} parent=11 // pred_check_branch
          %234 = sbr.rel (%p232) target = $region28
        $region27: #{up_forward.1} parent=11 // pred_region
          %s236 = ssub.s32 12288, 12288
          %237 = vsyncadd [#allocation5], %s236
          %s238 = sshll.u32 [#allocation4], 4
          %s239 = int_to_ptr.vmem [resolvable:$true] %s238
          %244 = dma.hbm_to_vmem [thread:$0]  %s5, 12288, %s239, [#allocation5], 128, 128, 8
        $region28: #{up_forward.1} parent=11 // pred_fallthru
          _
        // Predicated region
        $region29: #{up_forward.1} parent=11 // pred_check
          %p245 = pneg %p172
        $region30: #{up_forward.1} parent=11 // pred_check_branch
          %247 = sbr.rel (%p245) target = $region32
        $region31: #{up_forward.1} parent=11 // pred_region
          _
        $region32: #{up_forward.1} parent=11 // pred_fallthru
          _
      $region12: #{up_forward.1} parent=5 // pred_fallthru
        _
      %p248 = scmp.lt.s32.totalorder %s15, 2
      // Predicated region
      $region33: #{up_forward.1} parent=5 // pred_check
        %p249 = pneg %p248
      $region34: #{up_forward.1} parent=5 // pred_check_branch
        %251 = sbr.rel (%p249) target = $region36
      $region35: #{up_forward.1} parent=5 // pred_region
        // Predicated region
        $region37: #{up_forward.1} parent=35 // pred_check
          %p252 = pneg %p35
        $region38: #{up_forward.1} parent=35 // pred_check_branch
          %254 = sbr.rel (%p252) target = $region40
        $region39: #{up_forward.1} parent=35 // pred_region
          %p255 = scmp.lt.s32.totalorder %s15, 1
          %s256 = scalar_select %p255, %s15, 1
          %s257 = smul.addr %s256, 8
          %s258 = scalar_lea.vmem %s0, %s257
        $region40: #{up_forward.1} parent=35 // pred_fallthru
          _
        // Predicated region
        $region41: #{up_forward.1} parent=35 // pred_check
          %p259 = pneg %p61
        $region42: #{up_forward.1} parent=35 // pred_check_branch
          %261 = sbr.rel (%p259) target = $region44
        $region43: #{up_forward.1} parent=35 // pred_region
          %p262 = scmp.lt.s32.totalorder %s15, 1
          %s263 = scalar_select %p262, %s15, 1
          %s264 = smul.addr %s263, 4
          %s265 = smul.addr %s264, 8
          %s266 = scalar_lea.vmem %s1, %s265
        $region44: #{up_forward.1} parent=35 // pred_fallthru
          _
      $region36: #{up_forward.1} parent=5 // pred_fallthru
        _
      %p267 = scmp.le.s32.totalorder 1, %s15
      %p268 = scmp.lt.s32.totalorder %s15, 3
      %p269 = pnand %p267, %p268
      %p270 = pneg %p269
      // Predicated region
      $region45: #{up_forward.1} parent=5 // pred_check
        _
      $region46: #{up_forward.1} parent=5 // pred_check_branch
        %272 = sbr.rel (%p269) target = $region48
      $region47: #{up_forward.1} parent=5 // pred_region
        %s273 = ssub.s32 %s15, 1
        // Predicated region
        $region49: #{up_forward.1} parent=47 // pred_check
          %p274 = pneg %p109
        $region50: #{up_forward.1} parent=47 // pred_check_branch
          %276 = sbr.rel (%p274) target = $region52
        $region51: #{up_forward.1} parent=47 // pred_region
          %277 = dma.done [#allocation3], 18432
        $region52: #{up_forward.1} parent=47 // pred_fallthru
          _
        // Predicated region
        $region53: #{up_forward.1} parent=47 // pred_check
          %p278 = pneg %p151
        $region54: #{up_forward.1} parent=47 // pred_check_branch
          %280 = sbr.rel (%p278) target = $region56
        $region55: #{up_forward.1} parent=47 // pred_region
          %281 = dma.done [#allocation5], 12288
        $region56: #{up_forward.1} parent=47 // pred_fallthru
          _
        %p282 = scmp.lt.s32.totalorder %s20, 1
        %s283 = scalar_select %p282, %s20, 1
        %s284 = smul.addr %s283, 8
        %s285 = scalar_lea.vmem %s0, %s284
        %p286 = pneg %p41
        %p287 = pneg %p38
        %p288 = scmp.lt.s32.totalorder %s20, 1
        %s289 = scalar_select %p288, %s20, 1
        %s290 = smul.addr %s289, 4
        %s291 = smul.addr %s290, 8
        %s292 = scalar_lea.vmem %s1, %s291
        %p293 = pneg %p67
        %p294 = pneg %p64
        %p295 = pneg %p88
        %p296 = pneg %p85
        %p297 = pneg %p109
        %p298 = pneg %p106
        %p299 = pneg %p130
        %p300 = pneg %p127
        %p301 = pneg %p151
        %p302 = pneg %p148
        %p303 = pneg %p172
        %p304 = pneg %p169
        %p305 = pneg %p198
        %p306 = pneg %p195
        %p307 = scmp.lt.s32.totalorder %s20, 1
        %s308 = scalar_select %p307, %s20, 1
        %s309 = smul.addr %s308, 4
        %s310 = smul.addr %s309, 8
        %s311 = scalar_lea.vmem %s7, %s310
        %p312 = scmp.lt.s32.totalorder %s20, 1
        %s313 = scalar_select %p312, %s20, 1
        %s314 = smul.addr %s313, 8
        %s315 = scalar_lea.vmem %s0, %s314
        %p316 = scmp.lt.s32.totalorder %s20, 1
        %s317 = scalar_select %p316, %s20, 1
        %s318 = smul.addr %s317, 4
        %s319 = smul.addr %s318, 8
        %s320 = scalar_lea.vmem %s1, %s319
        %p321 = scmp.lt.s32.totalorder %s20, 1
        %s322 = scalar_select %p321, %s20, 1
        %s323 = smul.addr %s322, 4
        %s324 = smul.addr %s323, 8
        %s325 = scalar_lea.vmem %s7, %s324
        %v327 = vld [vmem:[%s315] sm:$0xff]
        %v328 = vpack.c.bf16 %v327, %v327
        %v329 = vld [vmem:[%s320] sm:$0xff]
        %v330 = vld [vmem:[%s320 + $0x8] sm:$0xff]
        %v331 = vld [vmem:[%s320 + $0x10] sm:$0xff]
        %v332 = vld [vmem:[%s320 + $0x18] sm:$0xff]
        %v333 = vpack.c.bf16 %v331, %v329
        %v334 = vpack.c.bf16 %v332, %v330
        %v335 = vld [vmem:[%s2] sm:$0xf]
        %v336 = vld [vmem:[%s2 + $0x4] sm:$0xf]
        %v339 = vunpack.c.l.b16 %v335
        %v340 = vunpack.c.l.b16 %v336
        %v341 = vpack.c.b16 %v340, %v339
        %vm342 = vcmask 64512
        %v344 = vsel %vm342, %v341, 0
        %vm346 = vcmask 1043456
        %v348 = vsel %vm346, %v328, 0
        %350 = vmatprep.subr.bf16.mxu0 0
        %351 = vmatpush1.bf16.msra.mxu0 %v348
        %352 = vmatprep.subr.bf16.mxu0 0
        %353 = vmatpush1.bf16.msra.mxu0 0
        %354 = vmatprep.subr.bf16.mxu0 0
        %355 = vmatpush1.bf16.msra.mxu0 0
        %356 = vmatprep.subr.bf16.mxu0 0
        %357 = vmatpush1.bf16.msra.mxu0 0
        %358 = vmatprep.subr.bf16.mxu0 0
        %359 = vmatpush1.bf16.msra.mxu0 0
        %360 = vmatprep.subr.bf16.mxu0 0
        %361 = vmatpush1.bf16.msra.mxu0 0
        %362 = vmatprep.subr.bf16.mxu0 0
        %363 = vmatpush1.bf16.msra.mxu0 0
        %364 = vmatprep.subr.bf16.mxu0 0
        %365 = vmatpush1.bf16.msra.mxu0 0
        %366 = vmatprep.subr.bf16.mxu0 0
        %367 = vmatpush1.bf16.msra.mxu0 0
        %368 = vmatprep.subr.bf16.mxu0 0
        %369 = vmatpush1.bf16.msra.mxu0 0
        %370 = vmatprep.subr.bf16.mxu0 0
        %371 = vmatpush1.bf16.msra.mxu0 0
        %372 = vmatprep.subr.bf16.mxu0 0
        %373 = vmatpush1.bf16.msra.mxu0 0
        %374 = vmatprep.subr.bf16.mxu0 0
        %375 = vmatpush1.bf16.msra.mxu0 0
        %376 = vmatprep.subr.bf16.mxu0 0
        %377 = vmatpush1.bf16.msra.mxu0 0
        %378 = vmatprep.subr.bf16.mxu0 0
        %379 = vmatpush1.bf16.msra.mxu0 0
        %380 = vmatprep.subr.bf16.mxu0 0
        %381 = vmatpush1.bf16.msra.mxu0 0
        %382 = vmatprep.mubr.bf16.mxu0 0
        %383 = vmatmul.mubr.bf16.gmra.mrb[0].mxu0 %v344
        %v384 = vpop.f32.mrb[0].mxu0
        %v385 = vadd.f32 0.0, %v384
        %v386 = vpop.f32.mrb[0].mxu0
        %v387 = vpop.f32.mrb[0].mxu0
        %v388 = vadd.f32 0.0, %v387
        %v389 = vpop.f32.mrb[0].mxu0
        %390 = vdwg.mxu0
        %v391 = vpack.c.bf16 %v388, %v385
        %v393 = vshrl.u32 %v391, 16
        %v395 = vrot.slane %v393, 7
        %v396 = vshll.u32 %v391, 16
        %v398 = vor.u32 %v395, %v396
        %v400 = vshrl.u32 %v333, 16
        %v402 = vrot.slane %v400, 7
        %v403 = vshll.u32 %v333, 16
        %v405 = vor.u32 %v402, %v403
        %v407 = vshrl.u32 %v334, 16
        %v409 = vrot.slane %v407, 7
        %v410 = vshll.u32 %v334, 16
        %v412 = vor.u32 %v409, %v410
        %vm419 = vcmask 1040384
        %vm420 = vsmask.f32 256
        %vm421 = vmand %vm419, %vm420
        %v422 = vsel %vm421, 0, %v398
        %v423 = vsel %vm421, 0, %v405
        %v424 = vsel %vm421, 0, %v412
        %v425 = vsel %vm421, %v395, 0
        %v426 = vsel %vm421, %v402, 0
        %v427 = vsel %vm421, %v409, 0
        %v428 = vld [vmem:[#allocation2] sm:$0xff]
        %v429 = vld [vmem:[#allocation2 + $0x8] sm:$0xff]
        %v430 = vld [vmem:[#allocation2 + $0x10] sm:$0xff]
        %v431 = vld [vmem:[#allocation2 + $0x18] sm:$0xff]
        %v432 = vld [vmem:[#allocation2 + $0x20] sm:$0xff]
        %v433 = vld [vmem:[#allocation2 + $0x28] sm:$0xff]
        %v434 = vld [vmem:[#allocation2 + $0x30] sm:$0xff]
        %v435 = vld [vmem:[#allocation2 + $0x38] sm:$0xff]
        %v436 = vld [vmem:[#allocation2 + $0x40] sm:$0xff]
        %v437 = vld [vmem:[#allocation2 + $0x48] sm:$0xff]
        %v438 = vld [vmem:[#allocation2 + $0x50] sm:$0xff]
        %v439 = vld [vmem:[#allocation2 + $0x58] sm:$0xff]
        %v440 = vld [vmem:[#allocation2 + $0x60] sm:$0xff]
        %v441 = vld [vmem:[#allocation2 + $0x68] sm:$0xff]
        %v442 = vld [vmem:[#allocation2 + $0x70] sm:$0xff]
        %v443 = vld [vmem:[#allocation2 + $0x78] sm:$0xff]
        %v444 = vld [vmem:[#allocation2 + $0x80] sm:$0xff]
        %v445 = vld [vmem:[#allocation2 + $0x88] sm:$0xff]
        %v446 = vld [vmem:[#allocation2 + $0x90] sm:$0xff]
        %v447 = vld [vmem:[#allocation2 + $0x98] sm:$0xff]
        %v448 = vld [vmem:[#allocation2 + $0xa0] sm:$0xff]
        %v449 = vld [vmem:[#allocation2 + $0xa8] sm:$0xff]
        %v450 = vld [vmem:[#allocation2 + $0xb0] sm:$0xff]
        %v451 = vld [vmem:[#allocation2 + $0xb8] sm:$0xff]
        %v452 = vld [vmem:[#allocation2 + $0xc0] sm:$0xff]
        %v453 = vld [vmem:[#allocation2 + $0xc8] sm:$0xff]
        %v454 = vld [vmem:[#allocation2 + $0xd0] sm:$0xff]
        %v455 = vld [vmem:[#allocation2 + $0xd8] sm:$0xff]
        %v456 = vld [vmem:[#allocation2 + $0xe0] sm:$0xff]
        %v457 = vld [vmem:[#allocation2 + $0xe8] sm:$0xff]
        %v458 = vld [vmem:[#allocation2 + $0xf0] sm:$0xff]
        %v459 = vld [vmem:[#allocation2 + $0xf8] sm:$0xff]
        %v460 = vld [vmem:[#allocation2 + $0x100] sm:$0xff]
        %v461 = vld [vmem:[#allocation2 + $0x108] sm:$0xff]
        %v462 = vld [vmem:[#allocation2 + $0x110] sm:$0xff]
        %v463 = vld [vmem:[#allocation2 + $0x118] sm:$0xff]
        %v464 = vld [vmem:[#allocation2 + $0x120] sm:$0xff]
        %v465 = vld [vmem:[#allocation2 + $0x128] sm:$0xff]
        %v466 = vld [vmem:[#allocation2 + $0x130] sm:$0xff]
        %v467 = vld [vmem:[#allocation2 + $0x138] sm:$0xff]
        %v468 = vld [vmem:[#allocation2 + $0x140] sm:$0xff]
        %v469 = vld [vmem:[#allocation2 + $0x148] sm:$0xff]
        %v470 = vld [vmem:[#allocation2 + $0x150] sm:$0xff]
        %v471 = vld [vmem:[#allocation2 + $0x158] sm:$0xff]
        %v472 = vld [vmem:[#allocation2 + $0x160] sm:$0xff]
        %v473 = vld [vmem:[#allocation2 + $0x168] sm:$0xff]
        %v474 = vld [vmem:[#allocation2 + $0x170] sm:$0xff]
        %v475 = vld [vmem:[#allocation2 + $0x178] sm:$0xff]
        %s476 = scalar_lea.vmem [#allocation2], 384
        %v477 = vld [vmem:[%s476] sm:$0xff]
        %v478 = vld [vmem:[%s476 + $0x8] sm:$0xff]
        %v479 = vld [vmem:[%s476 + $0x10] sm:$0xff]
        %v480 = vld [vmem:[%s476 + $0x18] sm:$0xff]
        %v481 = vld [vmem:[%s476 + $0x20] sm:$0xff]
        %v482 = vld [vmem:[%s476 + $0x28] sm:$0xff]
        %v483 = vld [vmem:[%s476 + $0x30] sm:$0xff]
        %v484 = vld [vmem:[%s476 + $0x38] sm:$0xff]
        %v485 = vld [vmem:[%s476 + $0x40] sm:$0xff]
        %v486 = vld [vmem:[%s476 + $0x48] sm:$0xff]
        %v487 = vld [vmem:[%s476 + $0x50] sm:$0xff]
        %v488 = vld [vmem:[%s476 + $0x58] sm:$0xff]
        %v489 = vld [vmem:[%s476 + $0x60] sm:$0xff]
        %v490 = vld [vmem:[%s476 + $0x68] sm:$0xff]
        %v491 = vld [vmem:[%s476 + $0x70] sm:$0xff]
        %v492 = vld [vmem:[%s476 + $0x78] sm:$0xff]
        %v493 = vld [vmem:[%s476 + $0x80] sm:$0xff]
        %v494 = vld [vmem:[%s476 + $0x88] sm:$0xff]
        %v495 = vld [vmem:[%s476 + $0x90] sm:$0xff]
        %v496 = vld [vmem:[%s476 + $0x98] sm:$0xff]
        %v497 = vld [vmem:[%s476 + $0xa0] sm:$0xff]
        %v498 = vld [vmem:[%s476 + $0xa8] sm:$0xff]
        %v499 = vld [vmem:[%s476 + $0xb0] sm:$0xff]
        %v500 = vld [vmem:[%s476 + $0xb8] sm:$0xff]
        %v501 = vld [vmem:[%s476 + $0xc0] sm:$0xff]
        %v502 = vld [vmem:[%s476 + $0xc8] sm:$0xff]
        %v503 = vld [vmem:[%s476 + $0xd0] sm:$0xff]
        %v504 = vld [vmem:[%s476 + $0xd8] sm:$0xff]
        %v505 = vld [vmem:[%s476 + $0xe0] sm:$0xff]
        %v506 = vld [vmem:[%s476 + $0xe8] sm:$0xff]
        %v507 = vld [vmem:[%s476 + $0xf0] sm:$0xff]
        %v508 = vld [vmem:[%s476 + $0xf8] sm:$0xff]
        %v509 = vld [vmem:[%s476 + $0x100] sm:$0xff]
        %v510 = vld [vmem:[%s476 + $0x108] sm:$0xff]
        %v511 = vld [vmem:[%s476 + $0x110] sm:$0xff]
        %v512 = vld [vmem:[%s476 + $0x118] sm:$0xff]
        %v513 = vld [vmem:[%s476 + $0x120] sm:$0xff]
        %v514 = vld [vmem:[%s476 + $0x128] sm:$0xff]
        %v515 = vld [vmem:[%s476 + $0x130] sm:$0xff]
        %v516 = vld [vmem:[%s476 + $0x138] sm:$0xff]
        %v517 = vld [vmem:[%s476 + $0x140] sm:$0xff]
        %v518 = vld [vmem:[%s476 + $0x148] sm:$0xff]
        %v519 = vld [vmem:[%s476 + $0x150] sm:$0xff]
        %v520 = vld [vmem:[%s476 + $0x158] sm:$0xff]
        %v521 = vld [vmem:[%s476 + $0x160] sm:$0xff]
        %v522 = vld [vmem:[%s476 + $0x168] sm:$0xff]
        %v523 = vld [vmem:[%s476 + $0x170] sm:$0xff]
        %v524 = vld [vmem:[%s476 + $0x178] sm:$0xff]
        %vm525 = vsmask.f32 7424
        %v527 = vshrl.u32 %v422, 16
        %v529 = vshll.u32 %v422, 16
        %v531 = vrot.slane %v529, 1
        %v532 = vor.u32 %v527, %v531
        %v534 = vshll.u32 %v425, 16
        %v536 = vrot.slane %v534, 1
        %v537 = vsel %vm525, %v532, %v536
        %v539 = vshrl.u32 %v423, 16
        %v541 = vshll.u32 %v423, 16
        %v543 = vrot.slane %v541, 1
        %v544 = vor.u32 %v539, %v543
        %v546 = vshll.u32 %v426, 16
        %v548 = vrot.slane %v546, 1
        %v549 = vsel %vm525, %v544, %v548
        %v551 = vshrl.u32 %v424, 16
        %v553 = vshll.u32 %v424, 16
        %v555 = vrot.slane %v553, 1
        %v556 = vor.u32 %v551, %v555
        %v558 = vshll.u32 %v427, 16
        %v560 = vrot.slane %v558, 1
        %v561 = vsel %vm525, %v556, %v560
        %v613 = vunpack.c.l.b16 %v477
        %v614 = vunpack.c.h.b16 %v477
        %v615 = vunpack.c.l.b16 %v478
        %v616 = vunpack.c.h.b16 %v478
        %v617 = vunpack.c.l.b16 %v479
        %v618 = vunpack.c.h.b16 %v479
        %v619 = vunpack.c.l.b16 %v480
        %v620 = vunpack.c.h.b16 %v480
        %v621 = vunpack.c.l.b16 %v481
        %v622 = vunpack.c.h.b16 %v481
        %v623 = vunpack.c.l.b16 %v482
        %v624 = vunpack.c.h.b16 %v482
        %v625 = vunpack.c.l.b16 %v483
        %v626 = vunpack.c.h.b16 %v483
        %v627 = vunpack.c.l.b16 %v484
        %v628 = vunpack.c.h.b16 %v484
        %v629 = vunpack.c.l.b16 %v485
        %v630 = vunpack.c.h.b16 %v485
        %v631 = vunpack.c.l.b16 %v486
        %v632 = vunpack.c.h.b16 %v486
        %v633 = vunpack.c.l.b16 %v487
        %v634 = vunpack.c.h.b16 %v487
        %v635 = vunpack.c.l.b16 %v488
        %v636 = vunpack.c.h.b16 %v488
        %v637 = vunpack.c.l.b16 %v489
        %v638 = vunpack.c.h.b16 %v489
        %v639 = vunpack.c.l.b16 %v490
        %v640 = vunpack.c.h.b16 %v490
        %v641 = vunpack.c.l.b16 %v491
        %v642 = vunpack.c.h.b16 %v491
        %v643 = vunpack.c.l.b16 %v492
        %v644 = vunpack.c.h.b16 %v492
        %v645 = vunpack.c.l.b16 %v493
        %v646 = vunpack.c.h.b16 %v493
        %v647 = vunpack.c.l.b16 %v494
        %v648 = vunpack.c.h.b16 %v494
        %v649 = vunpack.c.l.b16 %v495
        %v650 = vunpack.c.h.b16 %v495
        %v651 = vunpack.c.l.b16 %v496
        %v652 = vunpack.c.h.b16 %v496
        %v653 = vunpack.c.l.b16 %v497
        %v654 = vunpack.c.h.b16 %v497
        %v655 = vunpack.c.l.b16 %v498
        %v656 = vunpack.c.h.b16 %v498
        %v657 = vunpack.c.l.b16 %v499
        %v658 = vunpack.c.h.b16 %v499
        %v659 = vunpack.c.l.b16 %v500
        %v660 = vunpack.c.h.b16 %v500
        %v661 = vunpack.c.l.b16 %v501
        %v662 = vunpack.c.h.b16 %v501
        %v663 = vunpack.c.l.b16 %v502
        %v664 = vunpack.c.h.b16 %v502
        %v665 = vunpack.c.l.b16 %v503
        %v666 = vunpack.c.h.b16 %v503
        %v667 = vunpack.c.l.b16 %v504
        %v668 = vunpack.c.h.b16 %v504
        %v669 = vunpack.c.l.b16 %v505
        %v670 = vunpack.c.h.b16 %v505
        %v671 = vunpack.c.l.b16 %v506
        %v672 = vunpack.c.h.b16 %v506
        %v673 = vunpack.c.l.b16 %v507
        %v674 = vunpack.c.h.b16 %v507
        %v675 = vunpack.c.l.b16 %v508
        %v676 = vunpack.c.h.b16 %v508
        %v677 = vunpack.c.l.b16 %v509
        %v678 = vunpack.c.h.b16 %v509
        %v679 = vunpack.c.l.b16 %v510
        %v680 = vunpack.c.h.b16 %v510
        %v681 = vunpack.c.l.b16 %v511
        %v682 = vunpack.c.h.b16 %v511
        %v683 = vunpack.c.l.b16 %v512
        %v684 = vunpack.c.h.b16 %v512
        %v685 = vunpack.c.l.b16 %v513
        %v686 = vunpack.c.h.b16 %v513
        %v687 = vunpack.c.l.b16 %v514
        %v688 = vunpack.c.h.b16 %v514
        %v689 = vunpack.c.l.b16 %v515
        %v690 = vunpack.c.h.b16 %v515
        %v691 = vunpack.c.l.b16 %v516
        %v692 = vunpack.c.h.b16 %v516
        %v693 = vunpack.c.l.b16 %v517
        %v694 = vunpack.c.h.b16 %v517
        %v695 = vunpack.c.l.b16 %v518
        %v696 = vunpack.c.h.b16 %v518
        %v697 = vunpack.c.l.b16 %v519
        %v698 = vunpack.c.h.b16 %v519
        %v699 = vunpack.c.l.b16 %v520
        %v700 = vunpack.c.h.b16 %v520
        %v701 = vunpack.c.l.b16 %v521
        %v702 = vunpack.c.h.b16 %v521
        %v703 = vunpack.c.l.b16 %v522
        %v704 = vunpack.c.h.b16 %v522
        %v705 = vunpack.c.l.b16 %v523
        %v706 = vunpack.c.h.b16 %v523
        %v707 = vunpack.c.l.b16 %v524
        %v708 = vunpack.c.h.b16 %v524
        %v709 = vpack.c.b16 %v615, %v613
        %v710 = vpack.c.b16 %v616, %v614
        %v711 = vpack.c.b16 %v619, %v617
        %v712 = vpack.c.b16 %v620, %v618
        %v713 = vpack.c.b16 %v623, %v621
        %v714 = vpack.c.b16 %v624, %v622
        %v715 = vpack.c.b16 %v627, %v625
        %v716 = vpack.c.b16 %v628, %v626
        %v717 = vpack.c.b16 %v631, %v629
        %v718 = vpack.c.b16 %v632, %v630
        %v719 = vpack.c.b16 %v635, %v633
        %v720 = vpack.c.b16 %v636, %v634
        %v721 = vpack.c.b16 %v639, %v637
        %v722 = vpack.c.b16 %v640, %v638
        %v723 = vpack.c.b16 %v643, %v641
        %v724 = vpack.c.b16 %v644, %v642
        %v725 = vpack.c.b16 %v647, %v645
        %v726 = vpack.c.b16 %v648, %v646
        %v727 = vpack.c.b16 %v651, %v649
        %v728 = vpack.c.b16 %v652, %v650
        %v729 = vpack.c.b16 %v655, %v653
        %v730 = vpack.c.b16 %v656, %v654
        %v731 = vpack.c.b16 %v659, %v657
        %v732 = vpack.c.b16 %v660, %v658
        %v733 = vpack.c.b16 %v663, %v661
        %v734 = vpack.c.b16 %v664, %v662
        %v735 = vpack.c.b16 %v667, %v665
        %v736 = vpack.c.b16 %v668, %v666
        %v737 = vpack.c.b16 %v671, %v669
        %v738 = vpack.c.b16 %v672, %v670
        %v739 = vpack.c.b16 %v675, %v673
        %v740 = vpack.c.b16 %v676, %v674
        %v741 = vpack.c.b16 %v679, %v677
        %v742 = vpack.c.b16 %v680, %v678
        %v743 = vpack.c.b16 %v683, %v681
        %v744 = vpack.c.b16 %v684, %v682
        %v745 = vpack.c.b16 %v687, %v685
        %v746 = vpack.c.b16 %v688, %v686
        %v747 = vpack.c.b16 %v691, %v689
        %v748 = vpack.c.b16 %v692, %v690
        %v749 = vpack.c.b16 %v695, %v693
        %v750 = vpack.c.b16 %v696, %v694
        %v751 = vpack.c.b16 %v699, %v697
        %v752 = vpack.c.b16 %v700, %v698
        %v753 = vpack.c.b16 %v703, %v701
        %v754 = vpack.c.b16 %v704, %v702
        %v755 = vpack.c.b16 %v707, %v705
        %v756 = vpack.c.b16 %v708, %v706
        %805 = vmatprep.subr.bf16.mxu0 %v710
        %806 = vmatpush1.bf16.msra.mxu0 %v709
        %807 = vmatprep.subr.bf16.mxu0 %v712
        %808 = vmatpush1.bf16.msra.mxu0 %v711
        %809 = vmatprep.subr.bf16.mxu0 %v714
        %810 = vmatpush1.bf16.msra.mxu0 %v713
        %811 = vmatprep.subr.bf16.mxu0 %v716
        %812 = vmatpush1.bf16.msra.mxu0 %v715
        %813 = vmatprep.subr.bf16.mxu0 %v718
        %814 = vmatpush1.bf16.msra.mxu0 %v717
        %815 = vmatprep.subr.bf16.mxu0 %v720
        %816 = vmatpush1.bf16.msra.mxu0 %v719
        %817 = vmatprep.subr.bf16.mxu0 %v722
        %818 = vmatpush1.bf16.msra.mxu0 %v721
        %819 = vmatprep.subr.bf16.mxu0 %v724
        %820 = vmatpush1.bf16.msra.mxu0 %v723
        %821 = vmatprep.subr.bf16.mxu0 %v726
        %822 = vmatpush1.bf16.msra.mxu0 %v725
        %823 = vmatprep.subr.bf16.mxu0 %v728
        %824 = vmatpush1.bf16.msra.mxu0 %v727
        %825 = vmatprep.subr.bf16.mxu0 %v730
        %826 = vmatpush1.bf16.msra.mxu0 %v729
        %827 = vmatprep.subr.bf16.mxu0 %v732
        %828 = vmatpush1.bf16.msra.mxu0 %v731
        %829 = vmatprep.subr.bf16.mxu0 %v734
        %830 = vmatpush1.bf16.msra.mxu0 %v733
        %831 = vmatprep.subr.bf16.mxu0 %v736
        %832 = vmatpush1.bf16.msra.mxu0 %v735
        %833 = vmatprep.subr.bf16.mxu0 %v738
        %834 = vmatpush1.bf16.msra.mxu0 %v737
        %835 = vmatprep.subr.bf16.mxu0 %v740
        %836 = vmatpush1.bf16.msra.mxu0 %v739
        %837 = vmatprep.mubr.bf16.mxu0 %v549
        %838 = vmatmul.mubr.bf16.gmra.mrb[0].mxu0 %v537
        %v839 = vpop.f32.mrb[0].mxu0
        %v840 = vadd.f32 0.0, %v839
        %v841 = vpop.f32.mrb[0].mxu0
        %v842 = vadd.f32 0.0, %v841
        %v843 = vpop.f32.mrb[0].mxu0
        %v844 = vadd.f32 0.0, %v843
        %v845 = vpop.f32.mrb[0].mxu0
        %v846 = vadd.f32 0.0, %v845
        %847 = vdwg.mxu0
        %848 = vmatprep.subr.bf16.mxu0 %v742
        %849 = vmatpush1.bf16.msra.mxu0 %v741
        %850 = vmatprep.subr.bf16.mxu0 %v744
        %851 = vmatpush1.bf16.msra.mxu0 %v743
        %852 = vmatprep.subr.bf16.mxu0 %v746
        %853 = vmatpush1.bf16.msra.mxu0 %v745
        %854 = vmatprep.subr.bf16.mxu0 %v748
        %855 = vmatpush1.bf16.msra.mxu0 %v747
        %856 = vmatprep.subr.bf16.mxu0 %v750
        %857 = vmatpush1.bf16.msra.mxu0 %v749
        %858 = vmatprep.subr.bf16.mxu0 %v752
        %859 = vmatpush1.bf16.msra.mxu0 %v751
        %860 = vmatprep.subr.bf16.mxu0 %v754
        %861 = vmatpush1.bf16.msra.mxu0 %v753
        %862 = vmatprep.subr.bf16.mxu0 %v756
        %863 = vmatpush1.bf16.msra.mxu0 %v755
        %864 = vmatprep.subr.bf16.mxu0 0
        %865 = vmatpush1.bf16.msra.mxu0 0
        %866 = vmatprep.subr.bf16.mxu0 0
        %867 = vmatpush1.bf16.msra.mxu0 0
        %868 = vmatprep.subr.bf16.mxu0 0
        %869 = vmatpush1.bf16.msra.mxu0 0
        %870 = vmatprep.subr.bf16.mxu0 0
        %871 = vmatpush1.bf16.msra.mxu0 0
        %872 = vmatprep.subr.bf16.mxu0 0
        %873 = vmatpush1.bf16.msra.mxu0 0
        %874 = vmatprep.subr.bf16.mxu0 0
        %875 = vmatpush1.bf16.msra.mxu0 0
        %876 = vmatprep.subr.bf16.mxu0 0
        %877 = vmatpush1.bf16.msra.mxu0 0
        %878 = vmatprep.subr.bf16.mxu0 0
        %879 = vmatpush1.bf16.msra.mxu0 0
        %880 = vmatprep.mubr.bf16.mxu0 0
        %881 = vmatmul.mubr.bf16.gmra.mrb[0].mxu0 %v561
        %v882 = vpop.f32.mrb[0].mxu0
        %v883 = vadd.f32 %v840, %v882
        %v884 = vpop.f32.mrb[0].mxu0
        %v885 = vadd.f32 %v842, %v884
        %v886 = vpop.f32.mrb[0].mxu0
        %v887 = vadd.f32 %v844, %v886
        %v888 = vpop.f32.mrb[0].mxu0
        %v889 = vadd.f32 %v846, %v888
        %890 = vdwg.mxu0
        %v939 = vunpack.c.l.b16 %v428
        %v940 = vunpack.c.h.b16 %v428
        %v941 = vunpack.c.l.b16 %v429
        %v942 = vunpack.c.h.b16 %v429
        %v943 = vunpack.c.l.b16 %v430
        %v944 = vunpack.c.h.b16 %v430
        %v945 = vunpack.c.l.b16 %v431
        %v946 = vunpack.c.h.b16 %v431
        %v947 = vunpack.c.l.b16 %v432
        %v948 = vunpack.c.h.b16 %v432
        %v949 = vunpack.c.l.b16 %v433
        %v950 = vunpack.c.h.b16 %v433
        %v951 = vunpack.c.l.b16 %v434
        %v952 = vunpack.c.h.b16 %v434
        %v953 = vunpack.c.l.b16 %v435
        %v954 = vunpack.c.h.b16 %v435
        %v955 = vunpack.c.l.b16 %v436
        %v956 = vunpack.c.h.b16 %v436
        %v957 = vunpack.c.l.b16 %v437
        %v958 = vunpack.c.h.b16 %v437
        %v959 = vunpack.c.l.b16 %v438
        %v960 = vunpack.c.h.b16 %v438
        %v961 = vunpack.c.l.b16 %v439
        %v962 = vunpack.c.h.b16 %v439
        %v963 = vunpack.c.l.b16 %v440
        %v964 = vunpack.c.h.b16 %v440
        %v965 = vunpack.c.l.b16 %v441
        %v966 = vunpack.c.h.b16 %v441
        %v967 = vunpack.c.l.b16 %v442
        %v968 = vunpack.c.h.b16 %v442
        %v969 = vunpack.c.l.b16 %v443
        %v970 = vunpack.c.h.b16 %v443
        %v971 = vunpack.c.l.b16 %v444
        %v972 = vunpack.c.h.b16 %v444
        %v973 = vunpack.c.l.b16 %v445
        %v974 = vunpack.c.h.b16 %v445
        %v975 = vunpack.c.l.b16 %v446
        %v976 = vunpack.c.h.b16 %v446
        %v977 = vunpack.c.l.b16 %v447
        %v978 = vunpack.c.h.b16 %v447
        %v979 = vunpack.c.l.b16 %v448
        %v980 = vunpack.c.h.b16 %v448
        %v981 = vunpack.c.l.b16 %v449
        %v982 = vunpack.c.h.b16 %v449
        %v983 = vunpack.c.l.b16 %v450
        %v984 = vunpack.c.h.b16 %v450
        %v985 = vunpack.c.l.b16 %v451
        %v986 = vunpack.c.h.b16 %v451
        %v987 = vunpack.c.l.b16 %v452
        %v988 = vunpack.c.h.b16 %v452
        %v989 = vunpack.c.l.b16 %v453
        %v990 = vunpack.c.h.b16 %v453
        %v991 = vunpack.c.l.b16 %v454
        %v992 = vunpack.c.h.b16 %v454
        %v993 = vunpack.c.l.b16 %v455
        %v994 = vunpack.c.h.b16 %v455
        %v995 = vunpack.c.l.b16 %v456
        %v996 = vunpack.c.h.b16 %v456
        %v997 = vunpack.c.l.b16 %v457
        %v998 = vunpack.c.h.b16 %v457
        %v999 = vunpack.c.l.b16 %v458
        %v1000 = vunpack.c.h.b16 %v458
        %v1001 = vunpack.c.l.b16 %v459
        %v1002 = vunpack.c.h.b16 %v459
        %v1003 = vunpack.c.l.b16 %v460
        %v1004 = vunpack.c.h.b16 %v460
        %v1005 = vunpack.c.l.b16 %v461
        %v1006 = vunpack.c.h.b16 %v461
        %v1007 = vunpack.c.l.b16 %v462
        %v1008 = vunpack.c.h.b16 %v462
        %v1009 = vunpack.c.l.b16 %v463
        %v1010 = vunpack.c.h.b16 %v463
        %v1011 = vunpack.c.l.b16 %v464
        %v1012 = vunpack.c.h.b16 %v464
        %v1013 = vunpack.c.l.b16 %v465
        %v1014 = vunpack.c.h.b16 %v465
        %v1015 = vunpack.c.l.b16 %v466
        %v1016 = vunpack.c.h.b16 %v466
        %v1017 = vunpack.c.l.b16 %v467
        %v1018 = vunpack.c.h.b16 %v467
        %v1019 = vunpack.c.l.b16 %v468
        %v1020 = vunpack.c.h.b16 %v468
        %v1021 = vunpack.c.l.b16 %v469
        %v1022 = vunpack.c.h.b16 %v469
        %v1023 = vunpack.c.l.b16 %v470
        %v1024 = vunpack.c.h.b16 %v470
        %v1025 = vunpack.c.l.b16 %v471
        %v1026 = vunpack.c.h.b16 %v471
        %v1027 = vunpack.c.l.b16 %v472
        %v1028 = vunpack.c.h.b16 %v472
        %v1029 = vunpack.c.l.b16 %v473
        %v1030 = vunpack.c.h.b16 %v473
        %v1031 = vunpack.c.l.b16 %v474
        %v1032 = vunpack.c.h.b16 %v474
        %v1033 = vunpack.c.l.b16 %v475
        %v1034 = vunpack.c.h.b16 %v475
        %v1035 = vpack.c.b16 %v941, %v939
        %v1036 = vpack.c.b16 %v942, %v940
        %v1037 = vpack.c.b16 %v945, %v943
        %v1038 = vpack.c.b16 %v946, %v944
        %v1039 = vpack.c.b16 %v949, %v947
        %v1040 = vpack.c.b16 %v950, %v948
        %v1041 = vpack.c.b16 %v953, %v951
        %v1042 = vpack.c.b16 %v954, %v952
        %v1043 = vpack.c.b16 %v957, %v955
        %v1044 = vpack.c.b16 %v958, %v956
        %v1045 = vpack.c.b16 %v961, %v959
        %v1046 = vpack.c.b16 %v962, %v960
        %v1047 = vpack.c.b16 %v965, %v963
        %v1048 = vpack.c.b16 %v966, %v964
        %v1049 = vpack.c.b16 %v969, %v967
        %v1050 = vpack.c.b16 %v970, %v968
        %v1051 = vpack.c.b16 %v973, %v971
        %v1052 = vpack.c.b16 %v974, %v972
        %v1053 = vpack.c.b16 %v977, %v975
        %v1054 = vpack.c.b16 %v978, %v976
        %v1055 = vpack.c.b16 %v981, %v979
        %v1056 = vpack.c.b16 %v982, %v980
        %v1057 = vpack.c.b16 %v985, %v983
        %v1058 = vpack.c.b16 %v986, %v984
        %v1059 = vpack.c.b16 %v989, %v987
        %v1060 = vpack.c.b16 %v990, %v988
        %v1061 = vpack.c.b16 %v993, %v991
        %v1062 = vpack.c.b16 %v994, %v992
        %v1063 = vpack.c.b16 %v997, %v995
        %v1064 = vpack.c.b16 %v998, %v996
        %v1065 = vpack.c.b16 %v1001, %v999
        %v1066 = vpack.c.b16 %v1002, %v1000
        %v1067 = vpack.c.b16 %v1005, %v1003
        %v1068 = vpack.c.b16 %v1006, %v1004
        %v1069 = vpack.c.b16 %v1009, %v1007
        %v1070 = vpack.c.b16 %v1010, %v1008
        %v1071 = vpack.c.b16 %v1013, %v1011
        %v1072 = vpack.c.b16 %v1014, %v1012
        %v1073 = vpack.c.b16 %v1017, %v1015
        %v1074 = vpack.c.b16 %v1018, %v1016
        %v1075 = vpack.c.b16 %v1021, %v1019
        %v1076 = vpack.c.b16 %v1022, %v1020
        %v1077 = vpack.c.b16 %v1025, %v1023
        %v1078 = vpack.c.b16 %v1026, %v1024
        %v1079 = vpack.c.b16 %v1029, %v1027
        %v1080 = vpack.c.b16 %v1030, %v1028
        %v1081 = vpack.c.b16 %v1033, %v1031
        %v1082 = vpack.c.b16 %v1034, %v1032
        %1131 = vmatprep.subr.bf16.mxu0 %v1036
        %1132 = vmatpush1.bf16.msra.mxu0 %v1035
        %1133 = vmatprep.subr.bf16.mxu0 %v1038
        %1134 = vmatpush1.bf16.msra.mxu0 %v1037
        %1135 = vmatprep.subr.bf16.mxu0 %v1040
        %1136 = vmatpush1.bf16.msra.mxu0 %v1039
        %1137 = vmatprep.subr.bf16.mxu0 %v1042
        %1138 = vmatpush1.bf16.msra.mxu0 %v1041
        %1139 = vmatprep.subr.bf16.mxu0 %v1044
        %1140 = vmatpush1.bf16.msra.mxu0 %v1043
        %1141 = vmatprep.subr.bf16.mxu0 %v1046
        %1142 = vmatpush1.bf16.msra.mxu0 %v1045
        %1143 = vmatprep.subr.bf16.mxu0 %v1048
        %1144 = vmatpush1.bf16.msra.mxu0 %v1047
        %1145 = vmatprep.subr.bf16.mxu0 %v1050
        %1146 = vmatpush1.bf16.msra.mxu0 %v1049
        %1147 = vmatprep.subr.bf16.mxu0 %v1052
        %1148 = vmatpush1.bf16.msra.mxu0 %v1051
        %1149 = vmatprep.subr.bf16.mxu0 %v1054
        %1150 = vmatpush1.bf16.msra.mxu0 %v1053
        %1151 = vmatprep.subr.bf16.mxu0 %v1056
        %1152 = vmatpush1.bf16.msra.mxu0 %v1055
        %1153 = vmatprep.subr.bf16.mxu0 %v1058
        %1154 = vmatpush1.bf16.msra.mxu0 %v1057
        %1155 = vmatprep.subr.bf16.mxu0 %v1060
        %1156 = vmatpush1.bf16.msra.mxu0 %v1059
        %1157 = vmatprep.subr.bf16.mxu0 %v1062
        %1158 = vmatpush1.bf16.msra.mxu0 %v1061
        %1159 = vmatprep.subr.bf16.mxu0 %v1064
        %1160 = vmatpush1.bf16.msra.mxu0 %v1063
        %1161 = vmatprep.subr.bf16.mxu0 %v1066
        %1162 = vmatpush1.bf16.msra.mxu0 %v1065
        %1163 = vmatprep.mubr.bf16.mxu0 %v423
        %1164 = vmatmul.mubr.bf16.gmra.mrb[0].mxu0 %v422
        %v1165 = vpop.f32.mrb[0].mxu0
        %v1166 = vadd.f32 %v883, %v1165
        %v1167 = vpop.f32.mrb[0].mxu0
        %v1168 = vadd.f32 %v885, %v1167
        %v1169 = vpop.f32.mrb[0].mxu0
        %v1170 = vadd.f32 %v887, %v1169
        %v1171 = vpop.f32.mrb[0].mxu0
        %v1172 = vadd.f32 %v889, %v1171
        %1173 = vdwg.mxu0
        %1174 = vmatprep.subr.bf16.mxu0 %v1068
        %1175 = vmatpush1.bf16.msra.mxu0 %v1067
        %1176 = vmatprep.subr.bf16.mxu0 %v1070
        %1177 = vmatpush1.bf16.msra.mxu0 %v1069
        %1178 = vmatprep.subr.bf16.mxu0 %v1072
        %1179 = vmatpush1.bf16.msra.mxu0 %v1071
        %1180 = vmatprep.subr.bf16.mxu0 %v1074
        %1181 = vmatpush1.bf16.msra.mxu0 %v1073
        %1182 = vmatprep.subr.bf16.mxu0 %v1076
        %1183 = vmatpush1.bf16.msra.mxu0 %v1075
        %1184 = vmatprep.subr.bf16.mxu0 %v1078
        %1185 = vmatpush1.bf16.msra.mxu0 %v1077
        %1186 = vmatprep.subr.bf16.mxu0 %v1080
        %1187 = vmatpush1.bf16.msra.mxu0 %v1079
        %1188 = vmatprep.subr.bf16.mxu0 %v1082
        %1189 = vmatpush1.bf16.msra.mxu0 %v1081
        %1190 = vmatprep.subr.bf16.mxu0 0
        %1191 = vmatpush1.bf16.msra.mxu0 0
        %1192 = vmatprep.subr.bf16.mxu0 0
        %1193 = vmatpush1.bf16.msra.mxu0 0
        %1194 = vmatprep.subr.bf16.mxu0 0
        %1195 = vmatpush1.bf16.msra.mxu0 0
        %1196 = vmatprep.subr.bf16.mxu0 0
        %1197 = vmatpush1.bf16.msra.mxu0 0
        %1198 = vmatprep.subr.bf16.mxu0 0
        %1199 = vmatpush1.bf16.msra.mxu0 0
        %1200 = vmatprep.subr.bf16.mxu0 0
        %1201 = vmatpush1.bf16.msra.mxu0 0
        %1202 = vmatprep.subr.bf16.mxu0 0
        %1203 = vmatpush1.bf16.msra.mxu0 0
        %1204 = vmatprep.subr.bf16.mxu0 0
        %1205 = vmatpush1.bf16.msra.mxu0 0
        %1206 = vmatprep.mubr.bf16.mxu0 0
        %1207 = vmatmul.mubr.bf16.gmra.mrb[0].mxu0 %v424
        %v1208 = vpop.f32.mrb[0].mxu0
        %v1209 = vadd.f32 %v1166, %v1208
        %v1210 = vpop.f32.mrb[0].mxu0
        %v1211 = vadd.f32 %v1168, %v1210
        %v1212 = vpop.f32.mrb[0].mxu0
        %v1213 = vadd.f32 %v1170, %v1212
        %v1214 = vpop.f32.mrb[0].mxu0
        %v1215 = vadd.f32 %v1172, %v1214
        %1216 = vdwg.mxu0
        %s1217 = scalar_lea.vmem [#allocation2], 768
        %v1218 = vld [vmem:[%s1217] sm:$0xff]
        %v1219 = vld [vmem:[%s1217 + $0x8] sm:$0xff]
        %v1220 = vld [vmem:[%s1217 + $0x10] sm:$0xff]
        %v1221 = vld [vmem:[%s1217 + $0x18] sm:$0xff]
        %v1222 = vld [vmem:[%s1217 + $0x20] sm:$0xff]
        %v1223 = vld [vmem:[%s1217 + $0x28] sm:$0xff]
        %v1224 = vld [vmem:[%s1217 + $0x30] sm:$0xff]
        %v1225 = vld [vmem:[%s1217 + $0x38] sm:$0xff]
        %v1226 = vld [vmem:[%s1217 + $0x40] sm:$0xff]
        %v1227 = vld [vmem:[%s1217 + $0x48] sm:$0xff]
        %v1228 = vld [vmem:[%s1217 + $0x50] sm:$0xff]
        %v1229 = vld [vmem:[%s1217 + $0x58] sm:$0xff]
        %v1230 = vld [vmem:[%s1217 + $0x60] sm:$0xff]
        %v1231 = vld [vmem:[%s1217 + $0x68] sm:$0xff]
        %v1232 = vld [vmem:[%s1217 + $0x70] sm:$0xff]
        %v1233 = vld [vmem:[%s1217 + $0x78] sm:$0xff]
        %v1234 = vld [vmem:[%s1217 + $0x80] sm:$0xff]
        %v1235 = vld [vmem:[%s1217 + $0x88] sm:$0xff]
        %v1236 = vld [vmem:[%s1217 + $0x90] sm:$0xff]
        %v1237 = vld [vmem:[%s1217 + $0x98] sm:$0xff]
        %v1238 = vld [vmem:[%s1217 + $0xa0] sm:$0xff]
        %v1239 = vld [vmem:[%s1217 + $0xa8] sm:$0xff]
        %v1240 = vld [vmem:[%s1217 + $0xb0] sm:$0xff]
        %v1241 = vld [vmem:[%s1217 + $0xb8] sm:$0xff]
        %v1242 = vld [vmem:[%s1217 + $0xc0] sm:$0xff]
        %v1243 = vld [vmem:[%s1217 + $0xc8] sm:$0xff]
        %v1244 = vld [vmem:[%s1217 + $0xd0] sm:$0xff]
        %v1245 = vld [vmem:[%s1217 + $0xd8] sm:$0xff]
        %v1246 = vld [vmem:[%s1217 + $0xe0] sm:$0xff]
        %v1247 = vld [vmem:[%s1217 + $0xe8] sm:$0xff]
        %v1248 = vld [vmem:[%s1217 + $0xf0] sm:$0xff]
        %v1249 = vld [vmem:[%s1217 + $0xf8] sm:$0xff]
        %v1250 = vld [vmem:[%s1217 + $0x100] sm:$0xff]
        %v1251 = vld [vmem:[%s1217 + $0x108] sm:$0xff]
        %v1252 = vld [vmem:[%s1217 + $0x110] sm:$0xff]
        %v1253 = vld [vmem:[%s1217 + $0x118] sm:$0xff]
        %v1254 = vld [vmem:[%s1217 + $0x120] sm:$0xff]
        %v1255 = vld [vmem:[%s1217 + $0x128] sm:$0xff]
        %v1256 = vld [vmem:[%s1217 + $0x130] sm:$0xff]
        %v1257 = vld [vmem:[%s1217 + $0x138] sm:$0xff]
        %v1258 = vld [vmem:[%s1217 + $0x140] sm:$0xff]
        %v1259 = vld [vmem:[%s1217 + $0x148] sm:$0xff]
        %v1260 = vld [vmem:[%s1217 + $0x150] sm:$0xff]
        %v1261 = vld [vmem:[%s1217 + $0x158] sm:$0xff]
        %v1262 = vld [vmem:[%s1217 + $0x160] sm:$0xff]
        %v1263 = vld [vmem:[%s1217 + $0x168] sm:$0xff]
        %v1264 = vld [vmem:[%s1217 + $0x170] sm:$0xff]
        %v1265 = vld [vmem:[%s1217 + $0x178] sm:$0xff]
        %vm1272 = vcmask 1046528
        %v1273 = vrot.slane %v422, 1
        %v1274 = vrot.slane %v425, 1
        %v1275 = vsel %vm1272, %v1273, %v1274
        %v1276 = vrot.slane %v423, 1
        %v1277 = vrot.slane %v426, 1
        %v1278 = vsel %vm1272, %v1276, %v1277
        %v1279 = vrot.slane %v424, 1
        %v1280 = vrot.slane %v427, 1
        %v1281 = vsel %vm1272, %v1279, %v1280
        %v1333 = vunpack.c.l.b16 %v1218
        %v1334 = vunpack.c.h.b16 %v1218
        %v1335 = vunpack.c.l.b16 %v1219
        %v1336 = vunpack.c.h.b16 %v1219
        %v1337 = vunpack.c.l.b16 %v1220
        %v1338 = vunpack.c.h.b16 %v1220
        %v1339 = vunpack.c.l.b16 %v1221
        %v1340 = vunpack.c.h.b16 %v1221
        %v1341 = vunpack.c.l.b16 %v1222
        %v1342 = vunpack.c.h.b16 %v1222
        %v1343 = vunpack.c.l.b16 %v1223
        %v1344 = vunpack.c.h.b16 %v1223
        %v1345 = vunpack.c.l.b16 %v1224
        %v1346 = vunpack.c.h.b16 %v1224
        %v1347 = vunpack.c.l.b16 %v1225
        %v1348 = vunpack.c.h.b16 %v1225
        %v1349 = vunpack.c.l.b16 %v1226
        %v1350 = vunpack.c.h.b16 %v1226
        %v1351 = vunpack.c.l.b16 %v1227
        %v1352 = vunpack.c.h.b16 %v1227
        %v1353 = vunpack.c.l.b16 %v1228
        %v1354 = vunpack.c.h.b16 %v1228
        %v1355 = vunpack.c.l.b16 %v1229
        %v1356 = vunpack.c.h.b16 %v1229
        %v1357 = vunpack.c.l.b16 %v1230
        %v1358 = vunpack.c.h.b16 %v1230
        %v1359 = vunpack.c.l.b16 %v1231
        %v1360 = vunpack.c.h.b16 %v1231
        %v1361 = vunpack.c.l.b16 %v1232
        %v1362 = vunpack.c.h.b16 %v1232
        %v1363 = vunpack.c.l.b16 %v1233
        %v1364 = vunpack.c.h.b16 %v1233
        %v1365 = vunpack.c.l.b16 %v1234
        %v1366 = vunpack.c.h.b16 %v1234
        %v1367 = vunpack.c.l.b16 %v1235
        %v1368 = vunpack.c.h.b16 %v1235
        %v1369 = vunpack.c.l.b16 %v1236
        %v1370 = vunpack.c.h.b16 %v1236
        %v1371 = vunpack.c.l.b16 %v1237
        %v1372 = vunpack.c.h.b16 %v1237
        %v1373 = vunpack.c.l.b16 %v1238
        %v1374 = vunpack.c.h.b16 %v1238
        %v1375 = vunpack.c.l.b16 %v1239
        %v1376 = vunpack.c.h.b16 %v1239
        %v1377 = vunpack.c.l.b16 %v1240
        %v1378 = vunpack.c.h.b16 %v1240
        %v1379 = vunpack.c.l.b16 %v1241
        %v1380 = vunpack.c.h.b16 %v1241
        %v1381 = vunpack.c.l.b16 %v1242
        %v1382 = vunpack.c.h.b16 %v1242
        %v1383 = vunpack.c.l.b16 %v1243
        %v1384 = vunpack.c.h.b16 %v1243
        %v1385 = vunpack.c.l.b16 %v1244
        %v1386 = vunpack.c.h.b16 %v1244
        %v1387 = vunpack.c.l.b16 %v1245
        %v1388 = vunpack.c.h.b16 %v1245
        %v1389 = vunpack.c.l.b16 %v1246
        %v1390 = vunpack.c.h.b16 %v1246
        %v1391 = vunpack.c.l.b16 %v1247
        %v1392 = vunpack.c.h.b16 %v1247
        %v1393 = vunpack.c.l.b16 %v1248
        %v1394 = vunpack.c.h.b16 %v1248
        %v1395 = vunpack.c.l.b16 %v1249
        %v1396 = vunpack.c.h.b16 %v1249
        %v1397 = vunpack.c.l.b16 %v1250
        %v1398 = vunpack.c.h.b16 %v1250
        %v1399 = vunpack.c.l.b16 %v1251
        %v1400 = vunpack.c.h.b16 %v1251
        %v1401 = vunpack.c.l.b16 %v1252
        %v1402 = vunpack.c.h.b16 %v1252
        %v1403 = vunpack.c.l.b16 %v1253
        %v1404 = vunpack.c.h.b16 %v1253
        %v1405 = vunpack.c.l.b16 %v1254
        %v1406 = vunpack.c.h.b16 %v1254
        %v1407 = vunpack.c.l.b16 %v1255
        %v1408 = vunpack.c.h.b16 %v1255
        %v1409 = vunpack.c.l.b16 %v1256
        %v1410 = vunpack.c.h.b16 %v1256
        %v1411 = vunpack.c.l.b16 %v1257
        %v1412 = vunpack.c.h.b16 %v1257
        %v1413 = vunpack.c.l.b16 %v1258
        %v1414 = vunpack.c.h.b16 %v1258
        %v1415 = vunpack.c.l.b16 %v1259
        %v1416 = vunpack.c.h.b16 %v1259
        %v1417 = vunpack.c.l.b16 %v1260
        %v1418 = vunpack.c.h.b16 %v1260
        %v1419 = vunpack.c.l.b16 %v1261
        %v1420 = vunpack.c.h.b16 %v1261
        %v1421 = vunpack.c.l.b16 %v1262
        %v1422 = vunpack.c.h.b16 %v1262
        %v1423 = vunpack.c.l.b16 %v1263
        %v1424 = vunpack.c.h.b16 %v1263
        %v1425 = vunpack.c.l.b16 %v1264
        %v1426 = vunpack.c.h.b16 %v1264
        %v1427 = vunpack.c.l.b16 %v1265
        %v1428 = vunpack.c.h.b16 %v1265
        %v1429 = vpack.c.b16 %v1335, %v1333
        %v1430 = vpack.c.b16 %v1336, %v1334
        %v1431 = vpack.c.b16 %v1339, %v1337
        %v1432 = vpack.c.b16 %v1340, %v1338
        %v1433 = vpack.c.b16 %v1343, %v1341
        %v1434 = vpack.c.b16 %v1344, %v1342
        %v1435 = vpack.c.b16 %v1347, %v1345
        %v1436 = vpack.c.b16 %v1348, %v1346
        %v1437 = vpack.c.b16 %v1351, %v1349
        %v1438 = vpack.c.b16 %v1352, %v1350
        %v1439 = vpack.c.b16 %v1355, %v1353
        %v1440 = vpack.c.b16 %v1356, %v1354
        %v1441 = vpack.c.b16 %v1359, %v1357
        %v1442 = vpack.c.b16 %v1360, %v1358
        %v1443 = vpack.c.b16 %v1363, %v1361
        %v1444 = vpack.c.b16 %v1364, %v1362
        %v1445 = vpack.c.b16 %v1367, %v1365
        %v1446 = vpack.c.b16 %v1368, %v1366
        %v1447 = vpack.c.b16 %v1371, %v1369
        %v1448 = vpack.c.b16 %v1372, %v1370
        %v1449 = vpack.c.b16 %v1375, %v1373
        %v1450 = vpack.c.b16 %v1376, %v1374
        %v1451 = vpack.c.b16 %v1379, %v1377
        %v1452 = vpack.c.b16 %v1380, %v1378
        %v1453 = vpack.c.b16 %v1383, %v1381
        %v1454 = vpack.c.b16 %v1384, %v1382
        %v1455 = vpack.c.b16 %v1387, %v1385
        %v1456 = vpack.c.b16 %v1388, %v1386
        %v1457 = vpack.c.b16 %v1391, %v1389
        %v1458 = vpack.c.b16 %v1392, %v1390
        %v1459 = vpack.c.b16 %v1395, %v1393
        %v1460 = vpack.c.b16 %v1396, %v1394
        %v1461 = vpack.c.b16 %v1399, %v1397
        %v1462 = vpack.c.b16 %v1400, %v1398
        %v1463 = vpack.c.b16 %v1403, %v1401
        %v1464 = vpack.c.b16 %v1404, %v1402
        %v1465 = vpack.c.b16 %v1407, %v1405
        %v1466 = vpack.c.b16 %v1408, %v1406
        %v1467 = vpack.c.b16 %v1411, %v1409
        %v1468 = vpack.c.b16 %v1412, %v1410
        %v1469 = vpack.c.b16 %v1415, %v1413
        %v1470 = vpack.c.b16 %v1416, %v1414
        %v1471 = vpack.c.b16 %v1419, %v1417
        %v1472 = vpack.c.b16 %v1420, %v1418
        %v1473 = vpack.c.b16 %v1423, %v1421
        %v1474 = vpack.c.b16 %v1424, %v1422
        %v1475 = vpack.c.b16 %v1427, %v1425
        %v1476 = vpack.c.b16 %v1428, %v1426
        %1525 = vmatprep.subr.bf16.mxu0 %v1430
        %1526 = vmatpush1.bf16.msra.mxu0 %v1429
        %1527 = vmatprep.subr.bf16.mxu0 %v1432
        %1528 = vmatpush1.bf16.msra.mxu0 %v1431
        %1529 = vmatprep.subr.bf16.mxu0 %v1434
        %1530 = vmatpush1.bf16.msra.mxu0 %v1433
        %1531 = vmatprep.subr.bf16.mxu0 %v1436
        %1532 = vmatpush1.bf16.msra.mxu0 %v1435
        %1533 = vmatprep.subr.bf16.mxu0 %v1438
        %1534 = vmatpush1.bf16.msra.mxu0 %v1437
        %1535 = vmatprep.subr.bf16.mxu0 %v1440
        %1536 = vmatpush1.bf16.msra.mxu0 %v1439
        %1537 = vmatprep.subr.bf16.mxu0 %v1442
        %1538 = vmatpush1.bf16.msra.mxu0 %v1441
        %1539 = vmatprep.subr.bf16.mxu0 %v1444
        %1540 = vmatpush1.bf16.msra.mxu0 %v1443
        %1541 = vmatprep.subr.bf16.mxu0 %v1446
        %1542 = vmatpush1.bf16.msra.mxu0 %v1445
        %1543 = vmatprep.subr.bf16.mxu0 %v1448
        %1544 = vmatpush1.bf16.msra.mxu0 %v1447
        %1545 = vmatprep.subr.bf16.mxu0 %v1450
        %1546 = vmatpush1.bf16.msra.mxu0 %v1449
        %1547 = vmatprep.subr.bf16.mxu0 %v1452
        %1548 = vmatpush1.bf16.msra.mxu0 %v1451
        %1549 = vmatprep.subr.bf16.mxu0 %v1454
        %1550 = vmatpush1.bf16.msra.mxu0 %v1453
        %1551 = vmatprep.subr.bf16.mxu0 %v1456
        %1552 = vmatpush1.bf16.msra.mxu0 %v1455
        %1553 = vmatprep.subr.bf16.mxu0 %v1458
        %1554 = vmatpush1.bf16.msra.mxu0 %v1457
        %1555 = vmatprep.subr.bf16.mxu0 %v1460
        %1556 = vmatpush1.bf16.msra.mxu0 %v1459
        %1557 = vmatprep.mubr.bf16.mxu0 %v1278
        %1558 = vmatmul.mubr.bf16.gmra.mrb[0].mxu0 %v1275
        %v1559 = vpop.f32.mrb[0].mxu0
        %v1560 = vadd.f32 0.0, %v1559
        %v1561 = vpop.f32.mrb[0].mxu0
        %v1562 = vadd.f32 0.0, %v1561
        %v1563 = vpop.f32.mrb[0].mxu0
        %v1564 = vadd.f32 0.0, %v1563
        %v1565 = vpop.f32.mrb[0].mxu0
        %v1566 = vadd.f32 0.0, %v1565
        %1567 = vdwg.mxu0
        %1568 = vmatprep.subr.bf16.mxu0 %v1462
        %1569 = vmatpush1.bf16.msra.mxu0 %v1461
        %1570 = vmatprep.subr.bf16.mxu0 %v1464
        %1571 = vmatpush1.bf16.msra.mxu0 %v1463
        %1572 = vmatprep.subr.bf16.mxu0 %v1466
        %1573 = vmatpush1.bf16.msra.mxu0 %v1465
        %1574 = vmatprep.subr.bf16.mxu0 %v1468
        %1575 = vmatpush1.bf16.msra.mxu0 %v1467
        %1576 = vmatprep.subr.bf16.mxu0 %v1470
        %1577 = vmatpush1.bf16.msra.mxu0 %v1469
        %1578 = vmatprep.subr.bf16.mxu0 %v1472
        %1579 = vmatpush1.bf16.msra.mxu0 %v1471
        %1580 = vmatprep.subr.bf16.mxu0 %v1474
        %1581 = vmatpush1.bf16.msra.mxu0 %v1473
        %1582 = vmatprep.subr.bf16.mxu0 %v1476
        %1583 = vmatpush1.bf16.msra.mxu0 %v1475
        %1584 = vmatprep.subr.bf16.mxu0 0
        %1585 = vmatpush1.bf16.msra.mxu0 0
        %1586 = vmatprep.subr.bf16.mxu0 0
        %1587 = vmatpush1.bf16.msra.mxu0 0
        %1588 = vmatprep.subr.bf16.mxu0 0
        %1589 = vmatpush1.bf16.msra.mxu0 0
        %1590 = vmatprep.subr.bf16.mxu0 0
        %1591 = vmatpush1.bf16.msra.mxu0 0
        %1592 = vmatprep.subr.bf16.mxu0 0
        %1593 = vmatpush1.bf16.msra.mxu0 0
        %1594 = vmatprep.subr.bf16.mxu0 0
        %1595 = vmatpush1.bf16.msra.mxu0 0
        %1596 = vmatprep.subr.bf16.mxu0 0
        %1597 = vmatpush1.bf16.msra.mxu0 0
        %1598 = vmatprep.subr.bf16.mxu0 0
        %1599 = vmatpush1.bf16.msra.mxu0 0
        %1600 = vmatprep.mubr.bf16.mxu0 0
        %1601 = vmatmul.mubr.bf16.gmra.mrb[0].mxu0 %v1281
        %v1602 = vpop.f32.mrb[0].mxu0
        %v1603 = vadd.f32 %v1560, %v1602
        %v1604 = vpop.f32.mrb[0].mxu0
        %v1605 = vadd.f32 %v1562, %v1604
        %v1606 = vpop.f32.mrb[0].mxu0
        %v1607 = vadd.f32 %v1564, %v1606
        %v1608 = vpop.f32.mrb[0].mxu0
        %v1609 = vadd.f32 %v1566, %v1608
        %1610 = vdwg.mxu0
        %v1611 = vadd.f32 %v1209, %v1603
        %v1612 = vadd.f32 %v1211, %v1605
        %v1613 = vadd.f32 %v1213, %v1607
        %v1614 = vadd.f32 %v1215, %v1609
        %v1615 = vld [vmem:[%s4] sm:$0x3]
        %v1617 = vlaneseq
        %v1618 = vshrl.u32 %v1617, 7
        %v1619 = vsub.s32 0, %v1618
        %v1620 = vrot.slane %v1615, %v1619
        %v1621 = vlaneseq
        %v1622 = vshrl.u32 %v1621, 7
        %v1623 = vsub.s32 1, %v1622
        %v1624 = vrot.slane %v1615, %v1623
        %v1627 = vadd.f32 %v1611, %v1620
        %v1628 = vadd.f32 %v1612, %v1624
        %v1629 = vadd.f32 %v1613, %v1620
        %v1630 = vadd.f32 %v1614, %v1624
        %v1631 = vmax.f32 %v1627, 0.0
        %v1632 = vmax.f32 %v1628, 0.0
        %v1633 = vmax.f32 %v1629, 0.0
        %v1634 = vmax.f32 %v1630, 0.0
        %v1635 = vpack.c.bf16 %v1633, %v1631
        %v1636 = vpack.c.bf16 %v1634, %v1632
        %v1638 = vshrl.u32 %v1635, 16
        %v1640 = vrot.slane %v1638, 7
        %v1641 = vshll.u32 %v1635, 16
        %v1643 = vor.u32 %v1640, %v1641
        %v1645 = vshrl.u32 %v1636, 16
        %v1647 = vrot.slane %v1645, 7
        %v1648 = vshll.u32 %v1636, 16
        %v1650 = vor.u32 %v1647, %v1648
        %v1655 = vsel %vm421, 0, %v1643
        %v1656 = vsel %vm421, 0, %v1650
        %v1657 = vsel %vm421, %v1640, 0
        %v1658 = vsel %vm421, %v1647, 0
        %v1659 = vld [vmem:[#allocation4] sm:$0xff]
        %v1660 = vld [vmem:[#allocation4 + $0x8] sm:$0xff]
        %v1661 = vld [vmem:[#allocation4 + $0x10] sm:$0xff]
        %v1662 = vld [vmem:[#allocation4 + $0x18] sm:$0xff]
        %v1663 = vld [vmem:[#allocation4 + $0x20] sm:$0xff]
        %v1664 = vld [vmem:[#allocation4 + $0x28] sm:$0xff]
        %v1665 = vld [vmem:[#allocation4 + $0x30] sm:$0xff]
        %v1666 = vld [vmem:[#allocation4 + $0x38] sm:$0xff]
        %v1667 = vld [vmem:[#allocation4 + $0x40] sm:$0xff]
        %v1668 = vld [vmem:[#allocation4 + $0x48] sm:$0xff]
        %v1669 = vld [vmem:[#allocation4 + $0x50] sm:$0xff]
        %v1670 = vld [vmem:[#allocation4 + $0x58] sm:$0xff]
        %v1671 = vld [vmem:[#allocation4 + $0x60] sm:$0xff]
        %v1672 = vld [vmem:[#allocation4 + $0x68] sm:$0xff]
        %v1673 = vld [vmem:[#allocation4 + $0x70] sm:$0xff]
        %v1674 = vld [vmem:[#allocation4 + $0x78] sm:$0xff]
        %v1675 = vld [vmem:[#allocation4 + $0x80] sm:$0xff]
        %v1676 = vld [vmem:[#allocation4 + $0x88] sm:$0xff]
        %v1677 = vld [vmem:[#allocation4 + $0x90] sm:$0xff]
        %v1678 = vld [vmem:[#allocation4 + $0x98] sm:$0xff]
        %v1679 = vld [vmem:[#allocation4 + $0xa0] sm:$0xff]
        %v1680 = vld [vmem:[#allocation4 + $0xa8] sm:$0xff]
        %v1681 = vld [vmem:[#allocation4 + $0xb0] sm:$0xff]
        %v1682 = vld [vmem:[#allocation4 + $0xb8] sm:$0xff]
        %v1683 = vld [vmem:[#allocation4 + $0xc0] sm:$0xff]
        %v1684 = vld [vmem:[#allocation4 + $0xc8] sm:$0xff]
        %v1685 = vld [vmem:[#allocation4 + $0xd0] sm:$0xff]
        %v1686 = vld [vmem:[#allocation4 + $0xd8] sm:$0xff]
        %v1687 = vld [vmem:[#allocation4 + $0xe0] sm:$0xff]
        %v1688 = vld [vmem:[#allocation4 + $0xe8] sm:$0xff]
        %v1689 = vld [vmem:[#allocation4 + $0xf0] sm:$0xff]
        %v1690 = vld [vmem:[#allocation4 + $0xf8] sm:$0xff]
        %s1691 = scalar_lea.vmem [#allocation4], 256
        %v1692 = vld [vmem:[%s1691] sm:$0xff]
        %v1693 = vld [vmem:[%s1691 + $0x8] sm:$0xff]
        %v1694 = vld [vmem:[%s1691 + $0x10] sm:$0xff]
        %v1695 = vld [vmem:[%s1691 + $0x18] sm:$0xff]
        %v1696 = vld [vmem:[%s1691 + $0x20] sm:$0xff]
        %v1697 = vld [vmem:[%s1691 + $0x28] sm:$0xff]
        %v1698 = vld [vmem:[%s1691 + $0x30] sm:$0xff]
        %v1699 = vld [vmem:[%s1691 + $0x38] sm:$0xff]
        %v1700 = vld [vmem:[%s1691 + $0x40] sm:$0xff]
        %v1701 = vld [vmem:[%s1691 + $0x48] sm:$0xff]
        %v1702 = vld [vmem:[%s1691 + $0x50] sm:$0xff]
        %v1703 = vld [vmem:[%s1691 + $0x58] sm:$0xff]
        %v1704 = vld [vmem:[%s1691 + $0x60] sm:$0xff]
        %v1705 = vld [vmem:[%s1691 + $0x68] sm:$0xff]
        %v1706 = vld [vmem:[%s1691 + $0x70] sm:$0xff]
        %v1707 = vld [vmem:[%s1691 + $0x78] sm:$0xff]
        %v1708 = vld [vmem:[%s1691 + $0x80] sm:$0xff]
        %v1709 = vld [vmem:[%s1691 + $0x88] sm:$0xff]
        %v1710 = vld [vmem:[%s1691 + $0x90] sm:$0xff]
        %v1711 = vld [vmem:[%s1691 + $0x98] sm:$0xff]
        %v1712 = vld [vmem:[%s1691 + $0xa0] sm:$0xff]
        %v1713 = vld [vmem:[%s1691 + $0xa8] sm:$0xff]
        %v1714 = vld [vmem:[%s1691 + $0xb0] sm:$0xff]
        %v1715 = vld [vmem:[%s1691 + $0xb8] sm:$0xff]
        %v1716 = vld [vmem:[%s1691 + $0xc0] sm:$0xff]
        %v1717 = vld [vmem:[%s1691 + $0xc8] sm:$0xff]
        %v1718 = vld [vmem:[%s1691 + $0xd0] sm:$0xff]
        %v1719 = vld [vmem:[%s1691 + $0xd8] sm:$0xff]
        %v1720 = vld [vmem:[%s1691 + $0xe0] sm:$0xff]
        %v1721 = vld [vmem:[%s1691 + $0xe8] sm:$0xff]
        %v1722 = vld [vmem:[%s1691 + $0xf0] sm:$0xff]
        %v1723 = vld [vmem:[%s1691 + $0xf8] sm:$0xff]
        %v1725 = vshrl.u32 %v1655, 16
        %v1727 = vshll.u32 %v1655, 16
        %v1729 = vrot.slane %v1727, 1
        %v1730 = vor.u32 %v1725, %v1729
        %v1732 = vshll.u32 %v1657, 16
        %v1734 = vrot.slane %v1732, 1
        %v1735 = vsel %vm525, %v1730, %v1734
        %v1737 = vshrl.u32 %v1656, 16
        %v1739 = vshll.u32 %v1656, 16
        %v1741 = vrot.slane %v1739, 1
        %v1742 = vor.u32 %v1737, %v1741
        %v1744 = vshll.u32 %v1658, 16
        %v1746 = vrot.slane %v1744, 1
        %v1747 = vsel %vm525, %v1742, %v1746
        %v1782 = vunpack.c.l.b16 %v1692
        %v1783 = vunpack.c.h.b16 %v1692
        %v1784 = vunpack.c.l.b16 %v1693
        %v1785 = vunpack.c.h.b16 %v1693
        %v1786 = vunpack.c.l.b16 %v1694
        %v1787 = vunpack.c.h.b16 %v1694
        %v1788 = vunpack.c.l.b16 %v1695
        %v1789 = vunpack.c.h.b16 %v1695
        %v1790 = vunpack.c.l.b16 %v1696
        %v1791 = vunpack.c.h.b16 %v1696
        %v1792 = vunpack.c.l.b16 %v1697
        %v1793 = vunpack.c.h.b16 %v1697
        %v1794 = vunpack.c.l.b16 %v1698
        %v1795 = vunpack.c.h.b16 %v1698
        %v1796 = vunpack.c.l.b16 %v1699
        %v1797 = vunpack.c.h.b16 %v1699
        %v1798 = vunpack.c.l.b16 %v1700
        %v1799 = vunpack.c.h.b16 %v1700
        %v1800 = vunpack.c.l.b16 %v1701
        %v1801 = vunpack.c.h.b16 %v1701
        %v1802 = vunpack.c.l.b16 %v1702
        %v1803 = vunpack.c.h.b16 %v1702
        %v1804 = vunpack.c.l.b16 %v1703
        %v1805 = vunpack.c.h.b16 %v1703
        %v1806 = vunpack.c.l.b16 %v1704
        %v1807 = vunpack.c.h.b16 %v1704
        %v1808 = vunpack.c.l.b16 %v1705
        %v1809 = vunpack.c.h.b16 %v1705
        %v1810 = vunpack.c.l.b16 %v1706
        %v1811 = vunpack.c.h.b16 %v1706
        %v1812 = vunpack.c.l.b16 %v1707
        %v1813 = vunpack.c.h.b16 %v1707
        %v1814 = vunpack.c.l.b16 %v1708
        %v1815 = vunpack.c.h.b16 %v1708
        %v1816 = vunpack.c.l.b16 %v1709
        %v1817 = vunpack.c.h.b16 %v1709
        %v1818 = vunpack.c.l.b16 %v1710
        %v1819 = vunpack.c.h.b16 %v1710
        %v1820 = vunpack.c.l.b16 %v1711
        %v1821 = vunpack.c.h.b16 %v1711
        %v1822 = vunpack.c.l.b16 %v1712
        %v1823 = vunpack.c.h.b16 %v1712
        %v1824 = vunpack.c.l.b16 %v1713
        %v1825 = vunpack.c.h.b16 %v1713
        %v1826 = vunpack.c.l.b16 %v1714
        %v1827 = vunpack.c.h.b16 %v1714
        %v1828 = vunpack.c.l.b16 %v1715
        %v1829 = vunpack.c.h.b16 %v1715
        %v1830 = vunpack.c.l.b16 %v1716
        %v1831 = vunpack.c.h.b16 %v1716
        %v1832 = vunpack.c.l.b16 %v1717
        %v1833 = vunpack.c.h.b16 %v1717
        %v1834 = vunpack.c.l.b16 %v1718
        %v1835 = vunpack.c.h.b16 %v1718
        %v1836 = vunpack.c.l.b16 %v1719
        %v1837 = vunpack.c.h.b16 %v1719
        %v1838 = vunpack.c.l.b16 %v1720
        %v1839 = vunpack.c.h.b16 %v1720
        %v1840 = vunpack.c.l.b16 %v1721
        %v1841 = vunpack.c.h.b16 %v1721
        %v1842 = vunpack.c.l.b16 %v1722
        %v1843 = vunpack.c.h.b16 %v1722
        %v1844 = vunpack.c.l.b16 %v1723
        %v1845 = vunpack.c.h.b16 %v1723
        %v1846 = vpack.c.b16 %v1784, %v1782
        %v1847 = vpack.c.b16 %v1785, %v1783
        %v1848 = vpack.c.b16 %v1788, %v1786
        %v1849 = vpack.c.b16 %v1789, %v1787
        %v1850 = vpack.c.b16 %v1792, %v1790
        %v1851 = vpack.c.b16 %v1793, %v1791
        %v1852 = vpack.c.b16 %v1796, %v1794
        %v1853 = vpack.c.b16 %v1797, %v1795
        %v1854 = vpack.c.b16 %v1800, %v1798
        %v1855 = vpack.c.b16 %v1801, %v1799
        %v1856 = vpack.c.b16 %v1804, %v1802
        %v1857 = vpack.c.b16 %v1805, %v1803
        %v1858 = vpack.c.b16 %v1808, %v1806
        %v1859 = vpack.c.b16 %v1809, %v1807
        %v1860 = vpack.c.b16 %v1812, %v1810
        %v1861 = vpack.c.b16 %v1813, %v1811
        %v1862 = vpack.c.b16 %v1816, %v1814
        %v1863 = vpack.c.b16 %v1817, %v1815
        %v1864 = vpack.c.b16 %v1820, %v1818
        %v1865 = vpack.c.b16 %v1821, %v1819
        %v1866 = vpack.c.b16 %v1824, %v1822
        %v1867 = vpack.c.b16 %v1825, %v1823
        %v1868 = vpack.c.b16 %v1828, %v1826
        %v1869 = vpack.c.b16 %v1829, %v1827
        %v1870 = vpack.c.b16 %v1832, %v1830
        %v1871 = vpack.c.b16 %v1833, %v1831
        %v1872 = vpack.c.b16 %v1836, %v1834
        %v1873 = vpack.c.b16 %v1837, %v1835
        %v1874 = vpack.c.b16 %v1840, %v1838
        %v1875 = vpack.c.b16 %v1841, %v1839
        %v1876 = vpack.c.b16 %v1844, %v1842
        %v1877 = vpack.c.b16 %v1845, %v1843
        %1910 = vmatprep.subr.bf16.mxu0 %v1847
        %1911 = vmatpush1.bf16.msra.mxu0 %v1846
        %1912 = vmatprep.subr.bf16.mxu0 %v1849
        %1913 = vmatpush1.bf16.msra.mxu0 %v1848
        %1914 = vmatprep.subr.bf16.mxu0 %v1851
        %1915 = vmatpush1.bf16.msra.mxu0 %v1850
        %1916 = vmatprep.subr.bf16.mxu0 %v1853
        %1917 = vmatpush1.bf16.msra.mxu0 %v1852
        %1918 = vmatprep.subr.bf16.mxu0 %v1855
        %1919 = vmatpush1.bf16.msra.mxu0 %v1854
        %1920 = vmatprep.subr.bf16.mxu0 %v1857
        %1921 = vmatpush1.bf16.msra.mxu0 %v1856
        %1922 = vmatprep.subr.bf16.mxu0 %v1859
        %1923 = vmatpush1.bf16.msra.mxu0 %v1858
        %1924 = vmatprep.subr.bf16.mxu0 %v1861
        %1925 = vmatpush1.bf16.msra.mxu0 %v1860
        %1926 = vmatprep.subr.bf16.mxu0 %v1863
        %1927 = vmatpush1.bf16.msra.mxu0 %v1862
        %1928 = vmatprep.subr.bf16.mxu0 %v1865
        %1929 = vmatpush1.bf16.msra.mxu0 %v1864
        %1930 = vmatprep.subr.bf16.mxu0 %v1867
        %1931 = vmatpush1.bf16.msra.mxu0 %v1866
        %1932 = vmatprep.subr.bf16.mxu0 %v1869
        %1933 = vmatpush1.bf16.msra.mxu0 %v1868
        %1934 = vmatprep.subr.bf16.mxu0 %v1871
        %1935 = vmatpush1.bf16.msra.mxu0 %v1870
        %1936 = vmatprep.subr.bf16.mxu0 %v1873
        %1937 = vmatpush1.bf16.msra.mxu0 %v1872
        %1938 = vmatprep.subr.bf16.mxu0 %v1875
        %1939 = vmatpush1.bf16.msra.mxu0 %v1874
        %1940 = vmatprep.subr.bf16.mxu0 %v1877
        %1941 = vmatpush1.bf16.msra.mxu0 %v1876
        %1942 = vmatprep.mubr.bf16.mxu0 %v1747
        %1943 = vmatmul.mubr.bf16.gmra.mrb[0].mxu0 %v1735
        %v1944 = vpop.f32.mrb[0].mxu0
        %v1945 = vadd.f32 0.0, %v1944
        %v1946 = vpop.f32.mrb[0].mxu0
        %v1947 = vadd.f32 0.0, %v1946
        %v1948 = vpop.f32.mrb[0].mxu0
        %v1949 = vadd.f32 0.0, %v1948
        %v1950 = vpop.f32.mrb[0].mxu0
        %v1951 = vadd.f32 0.0, %v1950
        %1952 = vdwg.mxu0
        %v1985 = vunpack.c.l.b16 %v1659
        %v1986 = vunpack.c.h.b16 %v1659
        %v1987 = vunpack.c.l.b16 %v1660
        %v1988 = vunpack.c.h.b16 %v1660
        %v1989 = vunpack.c.l.b16 %v1661
        %v1990 = vunpack.c.h.b16 %v1661
        %v1991 = vunpack.c.l.b16 %v1662
        %v1992 = vunpack.c.h.b16 %v1662
        %v1993 = vunpack.c.l.b16 %v1663
        %v1994 = vunpack.c.h.b16 %v1663
        %v1995 = vunpack.c.l.b16 %v1664
        %v1996 = vunpack.c.h.b16 %v1664
        %v1997 = vunpack.c.l.b16 %v1665
        %v1998 = vunpack.c.h.b16 %v1665
        %v1999 = vunpack.c.l.b16 %v1666
        %v2000 = vunpack.c.h.b16 %v1666
        %v2001 = vunpack.c.l.b16 %v1667
        %v2002 = vunpack.c.h.b16 %v1667
        %v2003 = vunpack.c.l.b16 %v1668
        %v2004 = vunpack.c.h.b16 %v1668
        %v2005 = vunpack.c.l.b16 %v1669
        %v2006 = vunpack.c.h.b16 %v1669
        %v2007 = vunpack.c.l.b16 %v1670
        %v2008 = vunpack.c.h.b16 %v1670
        %v2009 = vunpack.c.l.b16 %v1671
        %v2010 = vunpack.c.h.b16 %v1671
        %v2011 = vunpack.c.l.b16 %v1672
        %v2012 = vunpack.c.h.b16 %v1672
        %v2013 = vunpack.c.l.b16 %v1673
        %v2014 = vunpack.c.h.b16 %v1673
        %v2015 = vunpack.c.l.b16 %v1674
        %v2016 = vunpack.c.h.b16 %v1674
        %v2017 = vunpack.c.l.b16 %v1675
        %v2018 = vunpack.c.h.b16 %v1675
        %v2019 = vunpack.c.l.b16 %v1676
        %v2020 = vunpack.c.h.b16 %v1676
        %v2021 = vunpack.c.l.b16 %v1677
        %v2022 = vunpack.c.h.b16 %v1677
        %v2023 = vunpack.c.l.b16 %v1678
        %v2024 = vunpack.c.h.b16 %v1678
        %v2025 = vunpack.c.l.b16 %v1679
        %v2026 = vunpack.c.h.b16 %v1679
        %v2027 = vunpack.c.l.b16 %v1680
        %v2028 = vunpack.c.h.b16 %v1680
        %v2029 = vunpack.c.l.b16 %v1681
        %v2030 = vunpack.c.h.b16 %v1681
        %v2031 = vunpack.c.l.b16 %v1682
        %v2032 = vunpack.c.h.b16 %v1682
        %v2033 = vunpack.c.l.b16 %v1683
        %v2034 = vunpack.c.h.b16 %v1683
        %v2035 = vunpack.c.l.b16 %v1684
        %v2036 = vunpack.c.h.b16 %v1684
        %v2037 = vunpack.c.l.b16 %v1685
        %v2038 = vunpack.c.h.b16 %v1685
        %v2039 = vunpack.c.l.b16 %v1686
        %v2040 = vunpack.c.h.b16 %v1686
        %v2041 = vunpack.c.l.b16 %v1687
        %v2042 = vunpack.c.h.b16 %v1687
        %v2043 = vunpack.c.l.b16 %v1688
        %v2044 = vunpack.c.h.b16 %v1688
        %v2045 = vunpack.c.l.b16 %v1689
        %v2046 = vunpack.c.h.b16 %v1689
        %v2047 = vunpack.c.l.b16 %v1690
        %v2048 = vunpack.c.h.b16 %v1690
        %v2049 = vpack.c.b16 %v1987, %v1985
        %v2050 = vpack.c.b16 %v1988, %v1986
        %v2051 = vpack.c.b16 %v1991, %v1989
        %v2052 = vpack.c.b16 %v1992, %v1990
        %v2053 = vpack.c.b16 %v1995, %v1993
        %v2054 = vpack.c.b16 %v1996, %v1994
        %v2055 = vpack.c.b16 %v1999, %v1997
        %v2056 = vpack.c.b16 %v2000, %v1998
        %v2057 = vpack.c.b16 %v2003, %v2001
        %v2058 = vpack.c.b16 %v2004, %v2002
        %v2059 = vpack.c.b16 %v2007, %v2005
        %v2060 = vpack.c.b16 %v2008, %v2006
        %v2061 = vpack.c.b16 %v2011, %v2009
        %v2062 = vpack.c.b16 %v2012, %v2010
        %v2063 = vpack.c.b16 %v2015, %v2013
        %v2064 = vpack.c.b16 %v2016, %v2014
        %v2065 = vpack.c.b16 %v2019, %v2017
        %v2066 = vpack.c.b16 %v2020, %v2018
        %v2067 = vpack.c.b16 %v2023, %v2021
        %v2068 = vpack.c.b16 %v2024, %v2022
        %v2069 = vpack.c.b16 %v2027, %v2025
        %v2070 = vpack.c.b16 %v2028, %v2026
        %v2071 = vpack.c.b16 %v2031, %v2029
        %v2072 = vpack.c.b16 %v2032, %v2030
        %v2073 = vpack.c.b16 %v2035, %v2033
        %v2074 = vpack.c.b16 %v2036, %v2034
        %v2075 = vpack.c.b16 %v2039, %v2037
        %v2076 = vpack.c.b16 %v2040, %v2038
        %v2077 = vpack.c.b16 %v2043, %v2041
        %v2078 = vpack.c.b16 %v2044, %v2042
        %v2079 = vpack.c.b16 %v2047, %v2045
        %v2080 = vpack.c.b16 %v2048, %v2046
        %2113 = vmatprep.subr.bf16.mxu0 %v2050
        %2114 = vmatpush1.bf16.msra.mxu0 %v2049
        %2115 = vmatprep.subr.bf16.mxu0 %v2052
        %2116 = vmatpush1.bf16.msra.mxu0 %v2051
        %2117 = vmatprep.subr.bf16.mxu0 %v2054
        %2118 = vmatpush1.bf16.msra.mxu0 %v2053
        %2119 = vmatprep.subr.bf16.mxu0 %v2056
        %2120 = vmatpush1.bf16.msra.mxu0 %v2055
        %2121 = vmatprep.subr.bf16.mxu0 %v2058
        %2122 = vmatpush1.bf16.msra.mxu0 %v2057
        %2123 = vmatprep.subr.bf16.mxu0 %v2060
        %2124 = vmatpush1.bf16.msra.mxu0 %v2059
        %2125 = vmatprep.subr.bf16.mxu0 %v2062
        %2126 = vmatpush1.bf16.msra.mxu0 %v2061
        %2127 = vmatprep.subr.bf16.mxu0 %v2064
        %2128 = vmatpush1.bf16.msra.mxu0 %v2063
        %2129 = vmatprep.subr.bf16.mxu0 %v2066
        %2130 = vmatpush1.bf16.msra.mxu0 %v2065
        %2131 = vmatprep.subr.bf16.mxu0 %v2068
        %2132 = vmatpush1.bf16.msra.mxu0 %v2067
        %2133 = vmatprep.subr.bf16.mxu0 %v2070
        %2134 = vmatpush1.bf16.msra.mxu0 %v2069
        %2135 = vmatprep.subr.bf16.mxu0 %v2072
        %2136 = vmatpush1.bf16.msra.mxu0 %v2071
        %2137 = vmatprep.subr.bf16.mxu0 %v2074
        %2138 = vmatpush1.bf16.msra.mxu0 %v2073
        %2139 = vmatprep.subr.bf16.mxu0 %v2076
        %2140 = vmatpush1.bf16.msra.mxu0 %v2075
        %2141 = vmatprep.subr.bf16.mxu0 %v2078
        %2142 = vmatpush1.bf16.msra.mxu0 %v2077
        %2143 = vmatprep.subr.bf16.mxu0 %v2080
        %2144 = vmatpush1.bf16.msra.mxu0 %v2079
        %2145 = vmatprep.mubr.bf16.mxu0 %v1656
        %2146 = vmatmul.mubr.bf16.gmra.mrb[0].mxu0 %v1655
        %v2147 = vpop.f32.mrb[0].mxu0
        %v2148 = vadd.f32 %v1945, %v2147
        %v2149 = vpop.f32.mrb[0].mxu0
        %v2150 = vadd.f32 %v1947, %v2149
        %v2151 = vpop.f32.mrb[0].mxu0
        %v2152 = vadd.f32 %v1949, %v2151
        %v2153 = vpop.f32.mrb[0].mxu0
        %v2154 = vadd.f32 %v1951, %v2153
        %2155 = vdwg.mxu0
        %s2156 = scalar_lea.vmem [#allocation4], 512
        %v2157 = vld [vmem:[%s2156] sm:$0xff]
        %v2158 = vld [vmem:[%s2156 + $0x8] sm:$0xff]
        %v2159 = vld [vmem:[%s2156 + $0x10] sm:$0xff]
        %v2160 = vld [vmem:[%s2156 + $0x18] sm:$0xff]
        %v2161 = vld [vmem:[%s2156 + $0x20] sm:$0xff]
        %v2162 = vld [vmem:[%s2156 + $0x28] sm:$0xff]
        %v2163 = vld [vmem:[%s2156 + $0x30] sm:$0xff]
        %v2164 = vld [vmem:[%s2156 + $0x38] sm:$0xff]
        %v2165 = vld [vmem:[%s2156 + $0x40] sm:$0xff]
        %v2166 = vld [vmem:[%s2156 + $0x48] sm:$0xff]
        %v2167 = vld [vmem:[%s2156 + $0x50] sm:$0xff]
        %v2168 = vld [vmem:[%s2156 + $0x58] sm:$0xff]
        %v2169 = vld [vmem:[%s2156 + $0x60] sm:$0xff]
        %v2170 = vld [vmem:[%s2156 + $0x68] sm:$0xff]
        %v2171 = vld [vmem:[%s2156 + $0x70] sm:$0xff]
        %v2172 = vld [vmem:[%s2156 + $0x78] sm:$0xff]
        %v2173 = vld [vmem:[%s2156 + $0x80] sm:$0xff]
        %v2174 = vld [vmem:[%s2156 + $0x88] sm:$0xff]
        %v2175 = vld [vmem:[%s2156 + $0x90] sm:$0xff]
        %v2176 = vld [vmem:[%s2156 + $0x98] sm:$0xff]
        %v2177 = vld [vmem:[%s2156 + $0xa0] sm:$0xff]
        %v2178 = vld [vmem:[%s2156 + $0xa8] sm:$0xff]
        %v2179 = vld [vmem:[%s2156 + $0xb0] sm:$0xff]
        %v2180 = vld [vmem:[%s2156 + $0xb8] sm:$0xff]
        %v2181 = vld [vmem:[%s2156 + $0xc0] sm:$0xff]
        %v2182 = vld [vmem:[%s2156 + $0xc8] sm:$0xff]
        %v2183 = vld [vmem:[%s2156 + $0xd0] sm:$0xff]
        %v2184 = vld [vmem:[%s2156 + $0xd8] sm:$0xff]
        %v2185 = vld [vmem:[%s2156 + $0xe0] sm:$0xff]
        %v2186 = vld [vmem:[%s2156 + $0xe8] sm:$0xff]
        %v2187 = vld [vmem:[%s2156 + $0xf0] sm:$0xff]
        %v2188 = vld [vmem:[%s2156 + $0xf8] sm:$0xff]
        %v2193 = vrot.slane %v1655, 1
        %v2194 = vrot.slane %v1657, 1
        %v2195 = vsel %vm1272, %v2193, %v2194
        %v2196 = vrot.slane %v1656, 1
        %v2197 = vrot.slane %v1658, 1
        %v2198 = vsel %vm1272, %v2196, %v2197
        %v2233 = vunpack.c.l.b16 %v2157
        %v2234 = vunpack.c.h.b16 %v2157
        %v2235 = vunpack.c.l.b16 %v2158
        %v2236 = vunpack.c.h.b16 %v2158
        %v2237 = vunpack.c.l.b16 %v2159
        %v2238 = vunpack.c.h.b16 %v2159
        %v2239 = vunpack.c.l.b16 %v2160
        %v2240 = vunpack.c.h.b16 %v2160
        %v2241 = vunpack.c.l.b16 %v2161
        %v2242 = vunpack.c.h.b16 %v2161
        %v2243 = vunpack.c.l.b16 %v2162
        %v2244 = vunpack.c.h.b16 %v2162
        %v2245 = vunpack.c.l.b16 %v2163
        %v2246 = vunpack.c.h.b16 %v2163
        %v2247 = vunpack.c.l.b16 %v2164
        %v2248 = vunpack.c.h.b16 %v2164
        %v2249 = vunpack.c.l.b16 %v2165
        %v2250 = vunpack.c.h.b16 %v2165
        %v2251 = vunpack.c.l.b16 %v2166
        %v2252 = vunpack.c.h.b16 %v2166
        %v2253 = vunpack.c.l.b16 %v2167
        %v2254 = vunpack.c.h.b16 %v2167
        %v2255 = vunpack.c.l.b16 %v2168
        %v2256 = vunpack.c.h.b16 %v2168
        %v2257 = vunpack.c.l.b16 %v2169
        %v2258 = vunpack.c.h.b16 %v2169
        %v2259 = vunpack.c.l.b16 %v2170
        %v2260 = vunpack.c.h.b16 %v2170
        %v2261 = vunpack.c.l.b16 %v2171
        %v2262 = vunpack.c.h.b16 %v2171
        %v2263 = vunpack.c.l.b16 %v2172
        %v2264 = vunpack.c.h.b16 %v2172
        %v2265 = vunpack.c.l.b16 %v2173
        %v2266 = vunpack.c.h.b16 %v2173
        %v2267 = vunpack.c.l.b16 %v2174
        %v2268 = vunpack.c.h.b16 %v2174
        %v2269 = vunpack.c.l.b16 %v2175
        %v2270 = vunpack.c.h.b16 %v2175
        %v2271 = vunpack.c.l.b16 %v2176
        %v2272 = vunpack.c.h.b16 %v2176
        %v2273 = vunpack.c.l.b16 %v2177
        %v2274 = vunpack.c.h.b16 %v2177
        %v2275 = vunpack.c.l.b16 %v2178
        %v2276 = vunpack.c.h.b16 %v2178
        %v2277 = vunpack.c.l.b16 %v2179
        %v2278 = vunpack.c.h.b16 %v2179
        %v2279 = vunpack.c.l.b16 %v2180
        %v2280 = vunpack.c.h.b16 %v2180
        %v2281 = vunpack.c.l.b16 %v2181
        %v2282 = vunpack.c.h.b16 %v2181
        %v2283 = vunpack.c.l.b16 %v2182
        %v2284 = vunpack.c.h.b16 %v2182
        %v2285 = vunpack.c.l.b16 %v2183
        %v2286 = vunpack.c.h.b16 %v2183
        %v2287 = vunpack.c.l.b16 %v2184
        %v2288 = vunpack.c.h.b16 %v2184
        %v2289 = vunpack.c.l.b16 %v2185
        %v2290 = vunpack.c.h.b16 %v2185
        %v2291 = vunpack.c.l.b16 %v2186
        %v2292 = vunpack.c.h.b16 %v2186
        %v2293 = vunpack.c.l.b16 %v2187
        %v2294 = vunpack.c.h.b16 %v2187
        %v2295 = vunpack.c.l.b16 %v2188
        %v2296 = vunpack.c.h.b16 %v2188
        %v2297 = vpack.c.b16 %v2235, %v2233
        %v2298 = vpack.c.b16 %v2236, %v2234
        %v2299 = vpack.c.b16 %v2239, %v2237
        %v2300 = vpack.c.b16 %v2240, %v2238
        %v2301 = vpack.c.b16 %v2243, %v2241
        %v2302 = vpack.c.b16 %v2244, %v2242
        %v2303 = vpack.c.b16 %v2247, %v2245
        %v2304 = vpack.c.b16 %v2248, %v2246
        %v2305 = vpack.c.b16 %v2251, %v2249
        %v2306 = vpack.c.b16 %v2252, %v2250
        %v2307 = vpack.c.b16 %v2255, %v2253
        %v2308 = vpack.c.b16 %v2256, %v2254
        %v2309 = vpack.c.b16 %v2259, %v2257
        %v2310 = vpack.c.b16 %v2260, %v2258
        %v2311 = vpack.c.b16 %v2263, %v2261
        %v2312 = vpack.c.b16 %v2264, %v2262
        %v2313 = vpack.c.b16 %v2267, %v2265
        %v2314 = vpack.c.b16 %v2268, %v2266
        %v2315 = vpack.c.b16 %v2271, %v2269
        %v2316 = vpack.c.b16 %v2272, %v2270
        %v2317 = vpack.c.b16 %v2275, %v2273
        %v2318 = vpack.c.b16 %v2276, %v2274
        %v2319 = vpack.c.b16 %v2279, %v2277
        %v2320 = vpack.c.b16 %v2280, %v2278
        %v2321 = vpack.c.b16 %v2283, %v2281
        %v2322 = vpack.c.b16 %v2284, %v2282
        %v2323 = vpack.c.b16 %v2287, %v2285
        %v2324 = vpack.c.b16 %v2288, %v2286
        %v2325 = vpack.c.b16 %v2291, %v2289
        %v2326 = vpack.c.b16 %v2292, %v2290
        %v2327 = vpack.c.b16 %v2295, %v2293
        %v2328 = vpack.c.b16 %v2296, %v2294
        %2361 = vmatprep.subr.bf16.mxu0 %v2298
        %2362 = vmatpush1.bf16.msra.mxu0 %v2297
        %2363 = vmatprep.subr.bf16.mxu0 %v2300
        %2364 = vmatpush1.bf16.msra.mxu0 %v2299
        %2365 = vmatprep.subr.bf16.mxu0 %v2302
        %2366 = vmatpush1.bf16.msra.mxu0 %v2301
        %2367 = vmatprep.subr.bf16.mxu0 %v2304
        %2368 = vmatpush1.bf16.msra.mxu0 %v2303
        %2369 = vmatprep.subr.bf16.mxu0 %v2306
        %2370 = vmatpush1.bf16.msra.mxu0 %v2305
        %2371 = vmatprep.subr.bf16.mxu0 %v2308
        %2372 = vmatpush1.bf16.msra.mxu0 %v2307
        %2373 = vmatprep.subr.bf16.mxu0 %v2310
        %2374 = vmatpush1.bf16.msra.mxu0 %v2309
        %2375 = vmatprep.subr.bf16.mxu0 %v2312
        %2376 = vmatpush1.bf16.msra.mxu0 %v2311
        %2377 = vmatprep.subr.bf16.mxu0 %v2314
        %2378 = vmatpush1.bf16.msra.mxu0 %v2313
        %2379 = vmatprep.subr.bf16.mxu0 %v2316
        %2380 = vmatpush1.bf16.msra.mxu0 %v2315
        %2381 = vmatprep.subr.bf16.mxu0 %v2318
        %2382 = vmatpush1.bf16.msra.mxu0 %v2317
        %2383 = vmatprep.subr.bf16.mxu0 %v2320
        %2384 = vmatpush1.bf16.msra.mxu0 %v2319
        %2385 = vmatprep.subr.bf16.mxu0 %v2322
        %2386 = vmatpush1.bf16.msra.mxu0 %v2321
        %2387 = vmatprep.subr.bf16.mxu0 %v2324
        %2388 = vmatpush1.bf16.msra.mxu0 %v2323
        %2389 = vmatprep.subr.bf16.mxu0 %v2326
        %2390 = vmatpush1.bf16.msra.mxu0 %v2325
        %2391 = vmatprep.subr.bf16.mxu0 %v2328
        %2392 = vmatpush1.bf16.msra.mxu0 %v2327
        %2393 = vmatprep.mubr.bf16.mxu0 %v2198
        %2394 = vmatmul.mubr.bf16.gmra.mrb[0].mxu0 %v2195
        %v2395 = vpop.f32.mrb[0].mxu0
        %v2396 = vadd.f32 0.0, %v2395
        %v2397 = vpop.f32.mrb[0].mxu0
        %v2398 = vadd.f32 0.0, %v2397
        %v2399 = vpop.f32.mrb[0].mxu0
        %v2400 = vadd.f32 0.0, %v2399
        %v2401 = vpop.f32.mrb[0].mxu0
        %v2402 = vadd.f32 0.0, %v2401
        %2403 = vdwg.mxu0
        %v2404 = vadd.f32 %v2148, %v2396
        %v2405 = vadd.f32 %v2150, %v2398
        %v2406 = vadd.f32 %v2152, %v2400
        %v2407 = vadd.f32 %v2154, %v2402
        %v2408 = vld [vmem:[%s6] sm:$0x3]
        %v2410 = vlaneseq
        %v2411 = vshrl.u32 %v2410, 7
        %v2412 = vsub.s32 0, %v2411
        %v2413 = vrot.slane %v2408, %v2412
        %v2414 = vlaneseq
        %v2415 = vshrl.u32 %v2414, 7
        %v2416 = vsub.s32 1, %v2415
        %v2417 = vrot.slane %v2408, %v2416
        %v2420 = vadd.f32 %v2404, %v2413
        %v2421 = vadd.f32 %v2405, %v2417
        %v2422 = vadd.f32 %v2406, %v2413
        %v2423 = vadd.f32 %v2407, %v2417
        %v2424 = vmax.f32 %v2420, 0.0
        %v2425 = vmax.f32 %v2421, 0.0
        %v2426 = vmax.f32 %v2422, 0.0
        %v2427 = vmax.f32 %v2423, 0.0
        %2428 = vst [vmem:[%s325] sm:$0xff] %v2424
        %2429 = vst [vmem:[%s325 + $0x8] sm:$0xff] %v2425
        %2430 = vst [vmem:[%s325 + $0x10] sm:$0xff] %v2426
        %2431 = vst [vmem:[%s325 + $0x18] sm:$0xff] %v2427
        %p2432 = scmp.lt.s32.totalorder %s20, 1
        %s2433 = scalar_select %p2432, %s20, 1
        %s2434 = smul.addr %s2433, 4
        %s2435 = smul.addr %s2434, 8
        %s2436 = scalar_lea.vmem %s7, %s2435
        // Predicated region
        $region57: #{up_forward.1} parent=47 // pred_check
          %p2437 = pneg %p195
        $region58: #{up_forward.1} parent=47 // pred_check_branch
          %2439 = sbr.rel (%p2437) target = $region60
        $region59: #{up_forward.1} parent=47 // pred_region
          _
        $region60: #{up_forward.1} parent=47 // pred_fallthru
          _
      $region48: #{up_forward.1} parent=5 // pred_fallthru
        _
      %p2440 = scmp.le.s32.totalorder 2, %s15
      // Predicated region
      $region61: #{up_forward.1} parent=5 // pred_check
        %p2441 = pneg %p2440
      $region62: #{up_forward.1} parent=5 // pred_check_branch
        %2443 = sbr.rel (%p2441) target = $region64
      $region63: #{up_forward.1} parent=5 // pred_region
        %s2444 = ssub.s32 %s15, 2
        // Predicated region
        $region65: #{up_forward.1} parent=63 // pred_check
          %p2445 = pneg %p201
        $region66: #{up_forward.1} parent=63 // pred_check_branch
          %2447 = sbr.rel (%p2445) target = $region68
        $region67: #{up_forward.1} parent=63 // pred_region
          %p2448 = scmp.lt.s32.totalorder %s21, 1
          %s2449 = scalar_select %p2448, %s21, 1
          %s2450 = smul.addr %s2449, 4
          %s2451 = smul.addr %s2450, 8
          %s2452 = scalar_lea.vmem %s7, %s2451
        $region68: #{up_forward.1} parent=63 // pred_fallthru
          _
      $region64: #{up_forward.1} parent=5 // pred_fallthru
        _
    $region6: #{up_forward.1} parent=1 // loop_footer
      %s19 = sadd.s32 1, %s15
    $region7: #{up_forward.1} parent=1 // loop_footer_branch
      %14 = sbr.rel target = $region3
    $region8: #{up_forward.1} parent=1 // loop_exit
      _
    %2453 = vsyncpa [#allocation3], 1
    %s2454 = scalar_lea.sflag [#allocation3], 1
    %2455 = vsyncpa %s2454, 1
    %2456 = vsyncpa [#allocation5], 1

</llo_original>
